<compile_context>
chip_gen: v7x
topology: tpu7x:2x2x1
jax: 0.10.0
libtpu: 0.0.40
codegen_flags: <defaults>
</compile_context>

<pallas_src>
import math

import jax
import jax.numpy as jnp
from jax.experimental import pallas as pl
from jax.experimental.pallas import tpu as pltpu


def _risk_kernel(fc_ref, fp_ref, w_ref, consts_ref, out_ref):
    """All three cumulative-probability heads, fused.

    fc_ref, fp_ref : (B, C, H*W)      native NCHW feature maps (no transpose)
    w_ref          : (2C, 3T+3)       packed weights, cols [hf|hc|hp|bf|bc|bp]
    consts_ref     : (8 + 3T+3, 3T+3) row 0 = packed bias row, rows 8.. =
                                      cumsum + base-broadcast matrix (zero-
                                      padded to square)
    out_ref        : (B, 3T+3)        cols [fused(T)|cur(T)|pri(T)|unused(3)]
    """
    n_cols = out_ref.shape[1]          # 3T + 3
    t3 = n_cols - 3                    # 3T  (hazard columns)

    # adaptive_avg_pool2d(x, 1).flatten(1) == mean over the spatial (lane)
    # axis.  f32 accumulation regardless of input dtype.
    xc = jnp.mean(fc_ref[...].astype(jnp.float32), axis=-1)   # (B, C)
    xp = jnp.mean(fp_ref[...].astype(jnp.float32), axis=-1)   # (B, C)

    # fused_feat = cat([cur, pri]); 128-aligned lane concat (C = 512).
    x = jnp.concatenate([xc, xp], axis=-1)                     # (B, 2C)

    bias = consts_ref[0:1, :]                                  # (1, 3T+3)
    m = consts_ref[8:, :]                                      # (3T+3, 3T+3)

    # One fused MXU projection for all ten per-head linears (hazard + base).
    y = jnp.dot(x, w_ref[...], preferred_element_type=jnp.float32) + bias

    # ReLU only the hazard columns (0..3T-1); base-hazard columns untouched.
    col = jax.lax.broadcasted_iota(jnp.int32, y.shape, 1)
    z = jnp.where(col < t3, jnp.maximum(y, 0.0), y)

    # Per-head cumulative sum + base-hazard broadcast + sigmoid, one matmul.
    out_ref[...] = jax.nn.sigmoid(
        jnp.dot(z, m, preferred_element_type=jnp.float32))


def _linear_params(key, in_features, out_features):
    """Deterministic nn.Linear-style init: U(-1/sqrt(in), 1/sqrt(in))."""
    kw, kb = jax.random.split(key)
    bound = 1.0 / math.sqrt(in_features)
    w = jax.random.uniform(kw, (in_features, out_features), jnp.float32,
                           -bound, bound)
    b = jax.random.uniform(kb, (1, out_features), jnp.float32, -bound, bound)
    return w, b


def make_params(key, num_years=5, feat_dim=512):
    T = num_years + 1
    keys = jax.random.split(key, 6)
    # Fused head (in_features = 2 * feat_dim); split into cur / pri halves.
    whf, bhf = _linear_params(keys[0], 2 * feat_dim, T)
    wbf, bbf = _linear_params(keys[1], 2 * feat_dim, 1)
    whc, bhc = _linear_params(keys[2], feat_dim, T)
    wbc, bbc = _linear_params(keys[3], feat_dim, 1)
    whp, bhp = _linear_params(keys[4], feat_dim, T)
    wbp, bbp = _linear_params(keys[5], feat_dim, 1)
    return dict(
        whf_c=whf[:feat_dim], whf_p=whf[feat_dim:], bhf=bhf,
        wbf_c=wbf[:feat_dim], wbf_p=wbf[feat_dim:], bbf=bbf,
        whc=whc, bhc=bhc, wbc=wbc, bbc=bbc,
        whp=whp, bhp=bhp, wbp=wbp, bbp=bbp,
    )


def pack_params(params):
    """One-time packing of the 10 tiny linears into one weight slab + consts.

    Done once (not per forward call) so the forward path is a single kernel.
    """
    C = params["whc"].shape[0]
    T = params["bhc"].shape[-1]
    t3 = 3 * T
    zt = jnp.zeros((C, T), jnp.float32)
    z1 = jnp.zeros((C, 1), jnp.float32)
    # Columns: [hf(T) | hc(T) | hp(T) | bf | bc | bp]
    w_cur = jnp.concatenate([params["whf_c"], params["whc"], zt,
                             params["wbf_c"], params["wbc"], z1], axis=1)
    w_pri = jnp.concatenate([params["whf_p"], zt, params["whp"],
                             params["wbf_p"], z1, params["wbp"]], axis=1)
    w = jnp.concatenate([w_cur, w_pri], axis=0)              # (2C, 3T+3)

    bias = jnp.concatenate([params["bhf"], params["bhc"], params["bhp"],
                            params["bbf"], params["bbc"], params["bbp"]],
                           axis=1)                            # (1, 3T+3)

    # (3T+3, 3T) combined cumulative-sum + base-broadcast matrix.
    r = jnp.arange(t3 + 3)[:, None]
    c = jnp.arange(t3)[None, :]
    cum = (c // T == r // T) & (c >= r)       # per-head upper-triangular cumsum
    base = (r - t3) == (c // T)               # broadcast base hazard over head
    m = jnp.where(r < t3, cum, base).astype(jnp.float32)
    m = jnp.concatenate([m, jnp.zeros((t3 + 3, 3), jnp.float32)], axis=1)

    # Pack bias (row 0) + M (rows 8..) into one constant array, keeping both
    # kernel-side slices 8-sublane aligned.
    consts = jnp.concatenate(
        [bias, jnp.zeros((7, t3 + 3), jnp.float32), m], axis=0)  # (8+3T+3, 3T+3)
    return {"w": w, "consts": consts}


def temporal_risk_forward(f_cur, f_pri, time_gap, packed):
    """f_cur, f_pri: (B, C, H, W) NCHW; time_gap: (B,) (unused by forward)."""
    del time_gap  # unused in the reference forward
    B, C, H, W = f_cur.shape
    n_cols = packed["w"].shape[1]      # 3T + 3
    T = (n_cols - 3) // 3

    # Free row-major reshape (no data movement), NOT a transpose.
    fc = f_cur.reshape(B, C, H * W)
    fp = f_pri.reshape(B, C, H * W)

    cost = pl.CostEstimate(
        flops=int(2 * B * C * H * W            # spatial means (both maps)
                  + 2 * B * 2 * C * n_cols     # fused projection
                  + 2 * B * n_cols * n_cols),  # cumsum matmul
        transcendentals=int(B * n_cols),       # sigmoid
        bytes_accessed=int(2 * B * C * H * W * f_cur.dtype.itemsize
                           + packed["w"].size * 4
                           + packed["consts"].size * 4
                           + B * n_cols * 4))

    vmem = pl.BlockSpec(memory_space=pltpu.MemorySpace.VMEM)
    out = pl.pallas_call(
        _risk_kernel,
        out_shape=jax.ShapeDtypeStruct((B, n_cols), jnp.float32),
        in_specs=[vmem] * 4,
        out_specs=vmem,
        cost_estimate=cost,
    )(fc, fp, packed["w"], packed["consts"])

    return {"pred_fused": out[:, :T],
            "pred_cur": out[:, T:2 * T],
            "pred_pri": out[:, 2 * T:3 * T]}


def _reference_forward(f_cur, f_pri, params):
    """Pure-JAX reference mirroring the PyTorch module, for verification."""
    xc = jnp.mean(f_cur, axis=(2, 3))
    xp = jnp.mean(f_pri, axis=(2, 3))
    T = params["bhc"].shape[-1]
    mask = jnp.tril(jnp.ones((T, T), jnp.float32)).T

    def head(x, wh, bh, wb, bb):
        h = jax.nn.relu(x @ wh + bh)
        cum = (h[:, :, None] * mask[None]).sum(axis=1) + (x @ wb + bb)
        return jax.nn.sigmoid(cum)

    whf = jnp.concatenate([params["whf_c"], params["whf_p"]], axis=0)
    wbf = jnp.concatenate([params["wbf_c"], params["wbf_p"]], axis=0)
    xf = jnp.concatenate([xc, xp], axis=1)
    return {
        "pred_fused": head(xf, whf, params["bhf"], wbf, params["bbf"]),
        "pred_cur": head(xc, params["whc"], params["bhc"], params["wbc"], params["bbc"]),
        "pred_pri": head(xp, params["whp"], params["bhp"], params["wbp"], params["bbp"]),
    }


if __name__ == "__main__":
    key = jax.random.PRNGKey(0)
    k_params, k_cur, k_pri, k_time = jax.random.split(key, 4)

    B, C, H, W = 2, 512, 8, 8  # C=512 is required by the module's heads
    num_years = 5

    f_cur = jax.random.normal(k_cur, (B, C, H, W), jnp.float32)
    f_pri = jax.random.normal(k_pri, (B, C, H, W), jnp.float32)
    time_gap = jax.random.uniform(k_time, (B,), jnp.float32, 0.0, 5.0)

    params = make_params(k_params, num_years=num_years, feat_dim=C)
    packed = pack_params(params)   # one-time weight/constant packing

    pred = temporal_risk_forward(f_cur, f_pri, time_gap, packed)
    jax.block_until_ready(pred)

    ref = _reference_forward(f_cur, f_pri, params)
    for name in ("pred_fused", "pred_cur", "pred_pri"):
        assert pred[name].shape == (B, num_years + 1)
        err = float(jnp.max(jnp.abs(pred[name] - ref[name])))
        # well below any wiring-error scale; allows for MXU f32-pass rounding
        assert err < 1e-4, f"{name} mismatch: {err}"

    print("KERNEL_OK")
</pallas_src>

<mosaic_0001>
module attributes {stable_mosaic.version = 11 : i64} {
  func.func @_risk_kernel(%arg0: memref<2x512x64xf32, #tpu.memory_space<vmem>>, %arg1: memref<2x512x64xf32, #tpu.memory_space<vmem>>, %arg2: memref<1024x21xf32, #tpu.memory_space<vmem>>, %arg3: memref<29x21xf32, #tpu.memory_space<vmem>>, %arg4: memref<2x21xf32, #tpu.memory_space<vmem>>) attributes {dimension_semantics = [], scalar_prefetch = 0 : i64, scratch_operands = 0 : i64, tpu.core_type = #tpu.core_type<tc>} {
    %c0 = arith.constant 0 : index
    %c0_0 = arith.constant 0 : index
    %c0_1 = arith.constant 0 : index
    %0 = vector.load %arg0[%c0, %c0_0, %c0_1] : memref<2x512x64xf32, #tpu.memory_space<vmem>>, vector<2x512x64xf32>
    %cst = arith.constant dense<0.000000e+00> : vector<2x512xf32>
    %1 = vector.multi_reduction <add>, %0, %cst [2] : vector<2x512x64xf32> to vector<2x512xf32>
    %cst_2 = arith.constant 6.400000e+01 : f32
    %2 = vector.broadcast %cst_2 : f32 to vector<2x512xf32>
    %3 = arith.divf %1, %2 : vector<2x512xf32>
    %c0_3 = arith.constant 0 : index
    %c0_4 = arith.constant 0 : index
    %c0_5 = arith.constant 0 : index
    %4 = vector.load %arg1[%c0_3, %c0_4, %c0_5] : memref<2x512x64xf32, #tpu.memory_space<vmem>>, vector<2x512x64xf32>
    %cst_6 = arith.constant dense<0.000000e+00> : vector<2x512xf32>
    %5 = vector.multi_reduction <add>, %4, %cst_6 [2] : vector<2x512x64xf32> to vector<2x512xf32>
    %cst_7 = arith.constant 6.400000e+01 : f32
    %6 = vector.broadcast %cst_7 : f32 to vector<2x512xf32>
    %7 = arith.divf %5, %6 : vector<2x512xf32>
    %8 = tpu.concatenate %3, %7 in 1 : vector<2x512xf32>, vector<2x512xf32> -> vector<2x1024xf32>
    %c0_8 = arith.constant 0 : index
    %c0_9 = arith.constant 0 : index
    %9 = vector.load %arg3[%c0_8, %c0_9] : memref<29x21xf32, #tpu.memory_space<vmem>>, vector<1x21xf32>
    %c8 = arith.constant 8 : index
    %c0_10 = arith.constant 0 : index
    %10 = vector.load %arg3[%c8, %c0_10] : memref<29x21xf32, #tpu.memory_space<vmem>>, vector<21x21xf32>
    %c0_11 = arith.constant 0 : index
    %c0_12 = arith.constant 0 : index
    %11 = vector.load %arg2[%c0_11, %c0_12] : memref<1024x21xf32, #tpu.memory_space<vmem>>, vector<1024x21xf32>
    %cst_13 = arith.constant dense<0.000000e+00> : vector<2x21xf32>
    %12 = tpu.matmul %8, %11, %cst_13 {dimension_numbers = #tpu.dot_dimension_numbers<[1], [0], [0], [1], [0, 0, 1, 1], [], []>} : vector<2x1024xf32>, vector<1024x21xf32>, vector<2x21xf32> -> vector<2x21xf32>
    %13 = vector.broadcast %9 : vector<1x21xf32> to vector<2x21xf32>
    %14 = arith.addf %12, %13 : vector<2x21xf32>
    %15 = tpu.iota {dimensions = array<i32: 1>} : vector<2x21xi32>
    %c18_i32 = arith.constant 18 : i32
    %16 = vector.broadcast %c18_i32 : i32 to vector<2x21xi32>
    %17 = arith.cmpi slt, %15, %16 : vector<2x21xi32>
    %cst_14 = arith.constant 0.000000e+00 : f32
    %18 = vector.broadcast %cst_14 : f32 to vector<2x21xf32>
    %19 = arith.maximumf %14, %18 : vector<2x21xf32>
    %20 = arith.select %17, %19, %14 : vector<2x21xi1>, vector<2x21xf32>
    %cst_15 = arith.constant dense<0.000000e+00> : vector<2x21xf32>
    %21 = tpu.matmul %20, %10, %cst_15 {dimension_numbers = #tpu.dot_dimension_numbers<[1], [0], [0], [1], [0, 0, 1, 1], [], []>} : vector<2x21xf32>, vector<21x21xf32>, vector<2x21xf32> -> vector<2x21xf32>
    %22 = arith.negf %21 : vector<2x21xf32>
    %23 = math.exp %22 : vector<2x21xf32>
    %cst_16 = arith.constant 1.000000e+00 : f32
    %24 = vector.broadcast %cst_16 : f32 to vector<2x21xf32>
    %25 = arith.addf %24, %23 : vector<2x21xf32>
    %26 = arith.divf %24, %25 : vector<2x21xf32>
    %c0_17 = arith.constant 0 : index
    %c0_18 = arith.constant 0 : index
    %27 = vector.load %arg4[%c0_17, %c0_18] : memref<2x21xf32, #tpu.memory_space<vmem>>, vector<2x21xf32>
    tpu.vector_store %arg4[%c0_17, %c0_18], %26 {strides = array<i32>} : memref<2x21xf32, #tpu.memory_space<vmem>>, vector<2x21xf32>,
    return
  }
}

</mosaic_0001>

<llo_original>
// kernel: tpu_custom_call.1
$region0: #{tpu_custom_call.1}
  #allocation0 [shape = 'u32[]', space=smem, size = 0x4, offset = 0x4, fixed_abs, tag = 'smem constant byte address 0x4 - core index']
  #allocation1 [shape = 'u32[144,128]{1,0:T(1,128)}', space=vmem, size = 0x12000, scoped, tag = 'internal scratch']
  %s0 = inlined_call_operand.vmem [shape: f32[2,512,64], index: 0, kind: input, shape index: {}]
  %s1 = inlined_call_operand.vmem [shape: f32[2,512,64], index: 1, kind: input, shape index: {}]
  %s2 = inlined_call_operand.vmem [shape: f32[1024,21], index: 2, kind: input, shape index: {}]
  %s3 = inlined_call_operand.vmem [shape: f32[29,21], index: 3, kind: input, shape index: {}]
  %s4 = inlined_call_operand.hbm [shape: f32[2,21], index: 4, kind: output, shape index: {}]
  %s5 = sld [smem:[#allocation0]]
  $region26: #{tpu_custom_call.1} parent=0
    _
  %s7 = ssub.s32 1, %s5
  %s8 = scalar_select 0, %s7, %s5
  $region1: #{tpu_custom_call.1} parent=0
    #allocation2 [shape = 'u8[1024]{0}', space=vmem, size = 0x400, scoped, tag = 'output window, operand 0, single buffered']
    #allocation3 [shape = 's32[1]{0}', space=sflag, size = 0x4, scoped, tag = 'scoped memory for tpu_custom_call.1']
    %9 = vsyncpa [#allocation3], 0
    // Predicated region
    $region2: #{tpu_custom_call.1} parent=1 // pred_check
      _
    $region3: #{tpu_custom_call.1} parent=1 // pred_check_branch
      %11 = sbr.rel (0) target = $region5
    $region4: #{tpu_custom_call.1} parent=1 // pred_region
      _
    $region5: #{tpu_custom_call.1} parent=1 // pred_fallthru
      _
    // Predicated region
    $region6: #{tpu_custom_call.1} parent=1 // pred_check
      _
    $region7: #{tpu_custom_call.1} parent=1 // pred_check_branch
      %13 = sbr.rel (0) target = $region9
    $region8: #{tpu_custom_call.1} parent=1 // pred_region
      _
    $region9: #{tpu_custom_call.1} parent=1 // pred_fallthru
      _
    // Predicated region
    $region10: #{tpu_custom_call.1} parent=1 // pred_check
      _
    $region11: #{tpu_custom_call.1} parent=1 // pred_check_branch
      %15 = sbr.rel (0) target = $region13
    $region12: #{tpu_custom_call.1} parent=1 // pred_region
      _
    $region13: #{tpu_custom_call.1} parent=1 // pred_fallthru
      _
    // Predicated region
    $region14: #{tpu_custom_call.1} parent=1 // pred_check
      _
    $region15: #{tpu_custom_call.1} parent=1 // pred_check_branch
      %17 = sbr.rel (0) target = $region17
    $region16: #{tpu_custom_call.1} parent=1 // pred_region
      _
    $region17: #{tpu_custom_call.1} parent=1 // pred_fallthru
      _
    %v18 = vld [vmem:[%s0] sm:$0xff]
    %v19 = vld [vmem:[%s0 + $0x8] sm:$0xff]
    %v20 = vld [vmem:[%s0 + $0x10] sm:$0xff]
    %v21 = vld [vmem:[%s0 + $0x18] sm:$0xff]
    %v22 = vld [vmem:[%s0 + $0x20] sm:$0xff]
    %v23 = vld [vmem:[%s0 + $0x28] sm:$0xff]
    %v24 = vld [vmem:[%s0 + $0x30] sm:$0xff]
    %v25 = vld [vmem:[%s0 + $0x38] sm:$0xff]
    %v26 = vld [vmem:[%s0 + $0x40] sm:$0xff]
    %v27 = vld [vmem:[%s0 + $0x48] sm:$0xff]
    %v28 = vld [vmem:[%s0 + $0x50] sm:$0xff]
    %v29 = vld [vmem:[%s0 + $0x58] sm:$0xff]
    %v30 = vld [vmem:[%s0 + $0x60] sm:$0xff]
    %v31 = vld [vmem:[%s0 + $0x68] sm:$0xff]
    %v32 = vld [vmem:[%s0 + $0x70] sm:$0xff]
    %v33 = vld [vmem:[%s0 + $0x78] sm:$0xff]
    %v34 = vld [vmem:[%s0 + $0x80] sm:$0xff]
    %v35 = vld [vmem:[%s0 + $0x88] sm:$0xff]
    %v36 = vld [vmem:[%s0 + $0x90] sm:$0xff]
    %v37 = vld [vmem:[%s0 + $0x98] sm:$0xff]
    %v38 = vld [vmem:[%s0 + $0xa0] sm:$0xff]
    %v39 = vld [vmem:[%s0 + $0xa8] sm:$0xff]
    %v40 = vld [vmem:[%s0 + $0xb0] sm:$0xff]
    %v41 = vld [vmem:[%s0 + $0xb8] sm:$0xff]
    %v42 = vld [vmem:[%s0 + $0xc0] sm:$0xff]
    %v43 = vld [vmem:[%s0 + $0xc8] sm:$0xff]
    %v44 = vld [vmem:[%s0 + $0xd0] sm:$0xff]
    %v45 = vld [vmem:[%s0 + $0xd8] sm:$0xff]
    %v46 = vld [vmem:[%s0 + $0xe0] sm:$0xff]
    %v47 = vld [vmem:[%s0 + $0xe8] sm:$0xff]
    %v48 = vld [vmem:[%s0 + $0xf0] sm:$0xff]
    %v49 = vld [vmem:[%s0 + $0xf8] sm:$0xff]
    %v50 = vld [vmem:[%s0 + $0x100] sm:$0xff]
    %v51 = vld [vmem:[%s0 + $0x108] sm:$0xff]
    %v52 = vld [vmem:[%s0 + $0x110] sm:$0xff]
    %v53 = vld [vmem:[%s0 + $0x118] sm:$0xff]
    %v54 = vld [vmem:[%s0 + $0x120] sm:$0xff]
    %v55 = vld [vmem:[%s0 + $0x128] sm:$0xff]
    %v56 = vld [vmem:[%s0 + $0x130] sm:$0xff]
    %v57 = vld [vmem:[%s0 + $0x138] sm:$0xff]
    %v58 = vld [vmem:[%s0 + $0x140] sm:$0xff]
    %v59 = vld [vmem:[%s0 + $0x148] sm:$0xff]
    %v60 = vld [vmem:[%s0 + $0x150] sm:$0xff]
    %v61 = vld [vmem:[%s0 + $0x158] sm:$0xff]
    %v62 = vld [vmem:[%s0 + $0x160] sm:$0xff]
    %v63 = vld [vmem:[%s0 + $0x168] sm:$0xff]
    %v64 = vld [vmem:[%s0 + $0x170] sm:$0xff]
    %v65 = vld [vmem:[%s0 + $0x178] sm:$0xff]
    %v66 = vld [vmem:[%s0 + $0x180] sm:$0xff]
    %v67 = vld [vmem:[%s0 + $0x188] sm:$0xff]
    %v68 = vld [vmem:[%s0 + $0x190] sm:$0xff]
    %v69 = vld [vmem:[%s0 + $0x198] sm:$0xff]
    %v70 = vld [vmem:[%s0 + $0x1a0] sm:$0xff]
    %v71 = vld [vmem:[%s0 + $0x1a8] sm:$0xff]
    %v72 = vld [vmem:[%s0 + $0x1b0] sm:$0xff]
    %v73 = vld [vmem:[%s0 + $0x1b8] sm:$0xff]
    %v74 = vld [vmem:[%s0 + $0x1c0] sm:$0xff]
    %v75 = vld [vmem:[%s0 + $0x1c8] sm:$0xff]
    %v76 = vld [vmem:[%s0 + $0x1d0] sm:$0xff]
    %v77 = vld [vmem:[%s0 + $0x1d8] sm:$0xff]
    %v78 = vld [vmem:[%s0 + $0x1e0] sm:$0xff]
    %v79 = vld [vmem:[%s0 + $0x1e8] sm:$0xff]
    %v80 = vld [vmem:[%s0 + $0x1f0] sm:$0xff]
    %v81 = vld [vmem:[%s0 + $0x1f8] sm:$0xff]
    %v82 = vld [vmem:[%s0 + $0x200] sm:$0xff]
    %v83 = vld [vmem:[%s0 + $0x208] sm:$0xff]
    %v84 = vld [vmem:[%s0 + $0x210] sm:$0xff]
    %v85 = vld [vmem:[%s0 + $0x218] sm:$0xff]
    %v86 = vld [vmem:[%s0 + $0x220] sm:$0xff]
    %v87 = vld [vmem:[%s0 + $0x228] sm:$0xff]
    %v88 = vld [vmem:[%s0 + $0x230] sm:$0xff]
    %v89 = vld [vmem:[%s0 + $0x238] sm:$0xff]
    %v90 = vld [vmem:[%s0 + $0x240] sm:$0xff]
    %v91 = vld [vmem:[%s0 + $0x248] sm:$0xff]
    %v92 = vld [vmem:[%s0 + $0x250] sm:$0xff]
    %v93 = vld [vmem:[%s0 + $0x258] sm:$0xff]
    %v94 = vld [vmem:[%s0 + $0x260] sm:$0xff]
    %v95 = vld [vmem:[%s0 + $0x268] sm:$0xff]
    %v96 = vld [vmem:[%s0 + $0x270] sm:$0xff]
    %v97 = vld [vmem:[%s0 + $0x278] sm:$0xff]
    %v98 = vld [vmem:[%s0 + $0x280] sm:$0xff]
    %v99 = vld [vmem:[%s0 + $0x288] sm:$0xff]
    %v100 = vld [vmem:[%s0 + $0x290] sm:$0xff]
    %v101 = vld [vmem:[%s0 + $0x298] sm:$0xff]
    %v102 = vld [vmem:[%s0 + $0x2a0] sm:$0xff]
    %v103 = vld [vmem:[%s0 + $0x2a8] sm:$0xff]
    %v104 = vld [vmem:[%s0 + $0x2b0] sm:$0xff]
    %v105 = vld [vmem:[%s0 + $0x2b8] sm:$0xff]
    %v106 = vld [vmem:[%s0 + $0x2c0] sm:$0xff]
    %v107 = vld [vmem:[%s0 + $0x2c8] sm:$0xff]
    %v108 = vld [vmem:[%s0 + $0x2d0] sm:$0xff]
    %v109 = vld [vmem:[%s0 + $0x2d8] sm:$0xff]
    %v110 = vld [vmem:[%s0 + $0x2e0] sm:$0xff]
    %v111 = vld [vmem:[%s0 + $0x2e8] sm:$0xff]
    %v112 = vld [vmem:[%s0 + $0x2f0] sm:$0xff]
    %v113 = vld [vmem:[%s0 + $0x2f8] sm:$0xff]
    %v114 = vld [vmem:[%s0 + $0x300] sm:$0xff]
    %v115 = vld [vmem:[%s0 + $0x308] sm:$0xff]
    %v116 = vld [vmem:[%s0 + $0x310] sm:$0xff]
    %v117 = vld [vmem:[%s0 + $0x318] sm:$0xff]
    %v118 = vld [vmem:[%s0 + $0x320] sm:$0xff]
    %v119 = vld [vmem:[%s0 + $0x328] sm:$0xff]
    %v120 = vld [vmem:[%s0 + $0x330] sm:$0xff]
    %v121 = vld [vmem:[%s0 + $0x338] sm:$0xff]
    %v122 = vld [vmem:[%s0 + $0x340] sm:$0xff]
    %v123 = vld [vmem:[%s0 + $0x348] sm:$0xff]
    %v124 = vld [vmem:[%s0 + $0x350] sm:$0xff]
    %v125 = vld [vmem:[%s0 + $0x358] sm:$0xff]
    %v126 = vld [vmem:[%s0 + $0x360] sm:$0xff]
    %v127 = vld [vmem:[%s0 + $0x368] sm:$0xff]
    %v128 = vld [vmem:[%s0 + $0x370] sm:$0xff]
    %v129 = vld [vmem:[%s0 + $0x378] sm:$0xff]
    %v130 = vld [vmem:[%s0 + $0x380] sm:$0xff]
    %v131 = vld [vmem:[%s0 + $0x388] sm:$0xff]
    %v132 = vld [vmem:[%s0 + $0x390] sm:$0xff]
    %v133 = vld [vmem:[%s0 + $0x398] sm:$0xff]
    %v134 = vld [vmem:[%s0 + $0x3a0] sm:$0xff]
    %v135 = vld [vmem:[%s0 + $0x3a8] sm:$0xff]
    %v136 = vld [vmem:[%s0 + $0x3b0] sm:$0xff]
    %v137 = vld [vmem:[%s0 + $0x3b8] sm:$0xff]
    %v138 = vld [vmem:[%s0 + $0x3c0] sm:$0xff]
    %v139 = vld [vmem:[%s0 + $0x3c8] sm:$0xff]
    %v140 = vld [vmem:[%s0 + $0x3d0] sm:$0xff]
    %v141 = vld [vmem:[%s0 + $0x3d8] sm:$0xff]
    %v142 = vld [vmem:[%s0 + $0x3e0] sm:$0xff]
    %v143 = vld [vmem:[%s0 + $0x3e8] sm:$0xff]
    %v144 = vld [vmem:[%s0 + $0x3f0] sm:$0xff]
    %v145 = vld [vmem:[%s0 + $0x3f8] sm:$0xff]
    %vm146 = vcmask 523264
    %v147 = vsel %vm146, %v18, 0.0
    %148 = vadd.xlane.f32.xlu0 %v147
    %v149 = vpop.xlane.xlu0 %148
    %v150 = vsel %vm146, %v19, 0.0
    %151 = vadd.xlane.f32.xlu0 %v150
    %v152 = vpop.xlane.xlu0 %151
    %v153 = vsel %vm146, %v20, 0.0
    %154 = vadd.xlane.f32.xlu0 %v153
    %v155 = vpop.xlane.xlu0 %154
    %v156 = vsel %vm146, %v21, 0.0
    %157 = vadd.xlane.f32.xlu0 %v156
    %v158 = vpop.xlane.xlu0 %157
    %v159 = vsel %vm146, %v22, 0.0
    %160 = vadd.xlane.f32.xlu0 %v159
    %v161 = vpop.xlane.xlu0 %160
    %v162 = vsel %vm146, %v23, 0.0
    %163 = vadd.xlane.f32.xlu0 %v162
    %v164 = vpop.xlane.xlu0 %163
    %v165 = vsel %vm146, %v24, 0.0
    %166 = vadd.xlane.f32.xlu0 %v165
    %v167 = vpop.xlane.xlu0 %166
    %v168 = vsel %vm146, %v25, 0.0
    %169 = vadd.xlane.f32.xlu0 %v168
    %v170 = vpop.xlane.xlu0 %169
    %v171 = vsel %vm146, %v26, 0.0
    %172 = vadd.xlane.f32.xlu0 %v171
    %v173 = vpop.xlane.xlu0 %172
    %v174 = vsel %vm146, %v27, 0.0
    %175 = vadd.xlane.f32.xlu0 %v174
    %v176 = vpop.xlane.xlu0 %175
    %v177 = vsel %vm146, %v28, 0.0
    %178 = vadd.xlane.f32.xlu0 %v177
    %v179 = vpop.xlane.xlu0 %178
    %v180 = vsel %vm146, %v29, 0.0
    %181 = vadd.xlane.f32.xlu0 %v180
    %v182 = vpop.xlane.xlu0 %181
    %v183 = vsel %vm146, %v30, 0.0
    %184 = vadd.xlane.f32.xlu0 %v183
    %v185 = vpop.xlane.xlu0 %184
    %v186 = vsel %vm146, %v31, 0.0
    %187 = vadd.xlane.f32.xlu0 %v186
    %v188 = vpop.xlane.xlu0 %187
    %v189 = vsel %vm146, %v32, 0.0
    %190 = vadd.xlane.f32.xlu0 %v189
    %v191 = vpop.xlane.xlu0 %190
    %v192 = vsel %vm146, %v33, 0.0
    %193 = vadd.xlane.f32.xlu0 %v192
    %v194 = vpop.xlane.xlu0 %193
    %v195 = vsel %vm146, %v34, 0.0
    %196 = vadd.xlane.f32.xlu0 %v195
    %v197 = vpop.xlane.xlu0 %196
    %v198 = vsel %vm146, %v35, 0.0
    %199 = vadd.xlane.f32.xlu0 %v198
    %v200 = vpop.xlane.xlu0 %199
    %v201 = vsel %vm146, %v36, 0.0
    %202 = vadd.xlane.f32.xlu0 %v201
    %v203 = vpop.xlane.xlu0 %202
    %v204 = vsel %vm146, %v37, 0.0
    %205 = vadd.xlane.f32.xlu0 %v204
    %v206 = vpop.xlane.xlu0 %205
    %v207 = vsel %vm146, %v38, 0.0
    %208 = vadd.xlane.f32.xlu0 %v207
    %v209 = vpop.xlane.xlu0 %208
    %v210 = vsel %vm146, %v39, 0.0
    %211 = vadd.xlane.f32.xlu0 %v210
    %v212 = vpop.xlane.xlu0 %211
    %v213 = vsel %vm146, %v40, 0.0
    %214 = vadd.xlane.f32.xlu0 %v213
    %v215 = vpop.xlane.xlu0 %214
    %v216 = vsel %vm146, %v41, 0.0
    %217 = vadd.xlane.f32.xlu0 %v216
    %v218 = vpop.xlane.xlu0 %217
    %v219 = vsel %vm146, %v42, 0.0
    %220 = vadd.xlane.f32.xlu0 %v219
    %v221 = vpop.xlane.xlu0 %220
    %v222 = vsel %vm146, %v43, 0.0
    %223 = vadd.xlane.f32.xlu0 %v222
    %v224 = vpop.xlane.xlu0 %223
    %v225 = vsel %vm146, %v44, 0.0
    %226 = vadd.xlane.f32.xlu0 %v225
    %v227 = vpop.xlane.xlu0 %226
    %v228 = vsel %vm146, %v45, 0.0
    %229 = vadd.xlane.f32.xlu0 %v228
    %v230 = vpop.xlane.xlu0 %229
    %v231 = vsel %vm146, %v46, 0.0
    %232 = vadd.xlane.f32.xlu0 %v231
    %v233 = vpop.xlane.xlu0 %232
    %v234 = vsel %vm146, %v47, 0.0
    %235 = vadd.xlane.f32.xlu0 %v234
    %v236 = vpop.xlane.xlu0 %235
    %v237 = vsel %vm146, %v48, 0.0
    %238 = vadd.xlane.f32.xlu0 %v237
    %v239 = vpop.xlane.xlu0 %238
    %v240 = vsel %vm146, %v49, 0.0
    %241 = vadd.xlane.f32.xlu0 %v240
    %v242 = vpop.xlane.xlu0 %241
    %v243 = vsel %vm146, %v50, 0.0
    %244 = vadd.xlane.f32.xlu0 %v243
    %v245 = vpop.xlane.xlu0 %244
    %v246 = vsel %vm146, %v51, 0.0
    %247 = vadd.xlane.f32.xlu0 %v246
    %v248 = vpop.xlane.xlu0 %247
    %v249 = vsel %vm146, %v52, 0.0
    %250 = vadd.xlane.f32.xlu0 %v249
    %v251 = vpop.xlane.xlu0 %250
    %v252 = vsel %vm146, %v53, 0.0
    %253 = vadd.xlane.f32.xlu0 %v252
    %v254 = vpop.xlane.xlu0 %253
    %v255 = vsel %vm146, %v54, 0.0
    %256 = vadd.xlane.f32.xlu0 %v255
    %v257 = vpop.xlane.xlu0 %256
    %v258 = vsel %vm146, %v55, 0.0
    %259 = vadd.xlane.f32.xlu0 %v258
    %v260 = vpop.xlane.xlu0 %259
    %v261 = vsel %vm146, %v56, 0.0
    %262 = vadd.xlane.f32.xlu0 %v261
    %v263 = vpop.xlane.xlu0 %262
    %v264 = vsel %vm146, %v57, 0.0
    %265 = vadd.xlane.f32.xlu0 %v264
    %v266 = vpop.xlane.xlu0 %265
    %v267 = vsel %vm146, %v58, 0.0
    %268 = vadd.xlane.f32.xlu0 %v267
    %v269 = vpop.xlane.xlu0 %268
    %v270 = vsel %vm146, %v59, 0.0
    %271 = vadd.xlane.f32.xlu0 %v270
    %v272 = vpop.xlane.xlu0 %271
    %v273 = vsel %vm146, %v60, 0.0
    %274 = vadd.xlane.f32.xlu0 %v273
    %v275 = vpop.xlane.xlu0 %274
    %v276 = vsel %vm146, %v61, 0.0
    %277 = vadd.xlane.f32.xlu0 %v276
    %v278 = vpop.xlane.xlu0 %277
    %v279 = vsel %vm146, %v62, 0.0
    %280 = vadd.xlane.f32.xlu0 %v279
    %v281 = vpop.xlane.xlu0 %280
    %v282 = vsel %vm146, %v63, 0.0
    %283 = vadd.xlane.f32.xlu0 %v282
    %v284 = vpop.xlane.xlu0 %283
    %v285 = vsel %vm146, %v64, 0.0
    %286 = vadd.xlane.f32.xlu0 %v285
    %v287 = vpop.xlane.xlu0 %286
    %v288 = vsel %vm146, %v65, 0.0
    %289 = vadd.xlane.f32.xlu0 %v288
    %v290 = vpop.xlane.xlu0 %289
    %v291 = vsel %vm146, %v66, 0.0
    %292 = vadd.xlane.f32.xlu0 %v291
    %v293 = vpop.xlane.xlu0 %292
    %v294 = vsel %vm146, %v67, 0.0
    %295 = vadd.xlane.f32.xlu0 %v294
    %v296 = vpop.xlane.xlu0 %295
    %v297 = vsel %vm146, %v68, 0.0
    %298 = vadd.xlane.f32.xlu0 %v297
    %v299 = vpop.xlane.xlu0 %298
    %v300 = vsel %vm146, %v69, 0.0
    %301 = vadd.xlane.f32.xlu0 %v300
    %v302 = vpop.xlane.xlu0 %301
    %v303 = vsel %vm146, %v70, 0.0
    %304 = vadd.xlane.f32.xlu0 %v303
    %v305 = vpop.xlane.xlu0 %304
    %v306 = vsel %vm146, %v71, 0.0
    %307 = vadd.xlane.f32.xlu0 %v306
    %v308 = vpop.xlane.xlu0 %307
    %v309 = vsel %vm146, %v72, 0.0
    %310 = vadd.xlane.f32.xlu0 %v309
    %v311 = vpop.xlane.xlu0 %310
    %v312 = vsel %vm146, %v73, 0.0
    %313 = vadd.xlane.f32.xlu0 %v312
    %v314 = vpop.xlane.xlu0 %313
    %v315 = vsel %vm146, %v74, 0.0
    %316 = vadd.xlane.f32.xlu0 %v315
    %v317 = vpop.xlane.xlu0 %316
    %v318 = vsel %vm146, %v75, 0.0
    %319 = vadd.xlane.f32.xlu0 %v318
    %v320 = vpop.xlane.xlu0 %319
    %v321 = vsel %vm146, %v76, 0.0
    %322 = vadd.xlane.f32.xlu0 %v321
    %v323 = vpop.xlane.xlu0 %322
    %v324 = vsel %vm146, %v77, 0.0
    %325 = vadd.xlane.f32.xlu0 %v324
    %v326 = vpop.xlane.xlu0 %325
    %v327 = vsel %vm146, %v78, 0.0
    %328 = vadd.xlane.f32.xlu0 %v327
    %v329 = vpop.xlane.xlu0 %328
    %v330 = vsel %vm146, %v79, 0.0
    %331 = vadd.xlane.f32.xlu0 %v330
    %v332 = vpop.xlane.xlu0 %331
    %v333 = vsel %vm146, %v80, 0.0
    %334 = vadd.xlane.f32.xlu0 %v333
    %v335 = vpop.xlane.xlu0 %334
    %v336 = vsel %vm146, %v81, 0.0
    %337 = vadd.xlane.f32.xlu0 %v336
    %v338 = vpop.xlane.xlu0 %337
    %v339 = vsel %vm146, %v82, 0.0
    %340 = vadd.xlane.f32.xlu0 %v339
    %v341 = vpop.xlane.xlu0 %340
    %v342 = vsel %vm146, %v83, 0.0
    %343 = vadd.xlane.f32.xlu0 %v342
    %v344 = vpop.xlane.xlu0 %343
    %v345 = vsel %vm146, %v84, 0.0
    %346 = vadd.xlane.f32.xlu0 %v345
    %v347 = vpop.xlane.xlu0 %346
    %v348 = vsel %vm146, %v85, 0.0
    %349 = vadd.xlane.f32.xlu0 %v348
    %v350 = vpop.xlane.xlu0 %349
    %v351 = vsel %vm146, %v86, 0.0
    %352 = vadd.xlane.f32.xlu0 %v351
    %v353 = vpop.xlane.xlu0 %352
    %v354 = vsel %vm146, %v87, 0.0
    %355 = vadd.xlane.f32.xlu0 %v354
    %v356 = vpop.xlane.xlu0 %355
    %v357 = vsel %vm146, %v88, 0.0
    %358 = vadd.xlane.f32.xlu0 %v357
    %v359 = vpop.xlane.xlu0 %358
    %v360 = vsel %vm146, %v89, 0.0
    %361 = vadd.xlane.f32.xlu0 %v360
    %v362 = vpop.xlane.xlu0 %361
    %v363 = vsel %vm146, %v90, 0.0
    %364 = vadd.xlane.f32.xlu0 %v363
    %v365 = vpop.xlane.xlu0 %364
    %v366 = vsel %vm146, %v91, 0.0
    %367 = vadd.xlane.f32.xlu0 %v366
    %v368 = vpop.xlane.xlu0 %367
    %v369 = vsel %vm146, %v92, 0.0
    %370 = vadd.xlane.f32.xlu0 %v369
    %v371 = vpop.xlane.xlu0 %370
    %v372 = vsel %vm146, %v93, 0.0
    %373 = vadd.xlane.f32.xlu0 %v372
    %v374 = vpop.xlane.xlu0 %373
    %v375 = vsel %vm146, %v94, 0.0
    %376 = vadd.xlane.f32.xlu0 %v375
    %v377 = vpop.xlane.xlu0 %376
    %v378 = vsel %vm146, %v95, 0.0
    %379 = vadd.xlane.f32.xlu0 %v378
    %v380 = vpop.xlane.xlu0 %379
    %v381 = vsel %vm146, %v96, 0.0
    %382 = vadd.xlane.f32.xlu0 %v381
    %v383 = vpop.xlane.xlu0 %382
    %v384 = vsel %vm146, %v97, 0.0
    %385 = vadd.xlane.f32.xlu0 %v384
    %v386 = vpop.xlane.xlu0 %385
    %v387 = vsel %vm146, %v98, 0.0
    %388 = vadd.xlane.f32.xlu0 %v387
    %v389 = vpop.xlane.xlu0 %388
    %v390 = vsel %vm146, %v99, 0.0
    %391 = vadd.xlane.f32.xlu0 %v390
    %v392 = vpop.xlane.xlu0 %391
    %v393 = vsel %vm146, %v100, 0.0
    %394 = vadd.xlane.f32.xlu0 %v393
    %v395 = vpop.xlane.xlu0 %394
    %v396 = vsel %vm146, %v101, 0.0
    %397 = vadd.xlane.f32.xlu0 %v396
    %v398 = vpop.xlane.xlu0 %397
    %v399 = vsel %vm146, %v102, 0.0
    %400 = vadd.xlane.f32.xlu0 %v399
    %v401 = vpop.xlane.xlu0 %400
    %v402 = vsel %vm146, %v103, 0.0
    %403 = vadd.xlane.f32.xlu0 %v402
    %v404 = vpop.xlane.xlu0 %403
    %v405 = vsel %vm146, %v104, 0.0
    %406 = vadd.xlane.f32.xlu0 %v405
    %v407 = vpop.xlane.xlu0 %406
    %v408 = vsel %vm146, %v105, 0.0
    %409 = vadd.xlane.f32.xlu0 %v408
    %v410 = vpop.xlane.xlu0 %409
    %v411 = vsel %vm146, %v106, 0.0
    %412 = vadd.xlane.f32.xlu0 %v411
    %v413 = vpop.xlane.xlu0 %412
    %v414 = vsel %vm146, %v107, 0.0
    %415 = vadd.xlane.f32.xlu0 %v414
    %v416 = vpop.xlane.xlu0 %415
    %v417 = vsel %vm146, %v108, 0.0
    %418 = vadd.xlane.f32.xlu0 %v417
    %v419 = vpop.xlane.xlu0 %418
    %v420 = vsel %vm146, %v109, 0.0
    %421 = vadd.xlane.f32.xlu0 %v420
    %v422 = vpop.xlane.xlu0 %421
    %v423 = vsel %vm146, %v110, 0.0
    %424 = vadd.xlane.f32.xlu0 %v423
    %v425 = vpop.xlane.xlu0 %424
    %v426 = vsel %vm146, %v111, 0.0
    %427 = vadd.xlane.f32.xlu0 %v426
    %v428 = vpop.xlane.xlu0 %427
    %v429 = vsel %vm146, %v112, 0.0
    %430 = vadd.xlane.f32.xlu0 %v429
    %v431 = vpop.xlane.xlu0 %430
    %v432 = vsel %vm146, %v113, 0.0
    %433 = vadd.xlane.f32.xlu0 %v432
    %v434 = vpop.xlane.xlu0 %433
    %v435 = vsel %vm146, %v114, 0.0
    %436 = vadd.xlane.f32.xlu0 %v435
    %v437 = vpop.xlane.xlu0 %436
    %v438 = vsel %vm146, %v115, 0.0
    %439 = vadd.xlane.f32.xlu0 %v438
    %v440 = vpop.xlane.xlu0 %439
    %v441 = vsel %vm146, %v116, 0.0
    %442 = vadd.xlane.f32.xlu0 %v441
    %v443 = vpop.xlane.xlu0 %442
    %v444 = vsel %vm146, %v117, 0.0
    %445 = vadd.xlane.f32.xlu0 %v444
    %v446 = vpop.xlane.xlu0 %445
    %v447 = vsel %vm146, %v118, 0.0
    %448 = vadd.xlane.f32.xlu0 %v447
    %v449 = vpop.xlane.xlu0 %448
    %v450 = vsel %vm146, %v119, 0.0
    %451 = vadd.xlane.f32.xlu0 %v450
    %v452 = vpop.xlane.xlu0 %451
    %v453 = vsel %vm146, %v120, 0.0
    %454 = vadd.xlane.f32.xlu0 %v453
    %v455 = vpop.xlane.xlu0 %454
    %v456 = vsel %vm146, %v121, 0.0
    %457 = vadd.xlane.f32.xlu0 %v456
    %v458 = vpop.xlane.xlu0 %457
    %v459 = vsel %vm146, %v122, 0.0
    %460 = vadd.xlane.f32.xlu0 %v459
    %v461 = vpop.xlane.xlu0 %460
    %v462 = vsel %vm146, %v123, 0.0
    %463 = vadd.xlane.f32.xlu0 %v462
    %v464 = vpop.xlane.xlu0 %463
    %v465 = vsel %vm146, %v124, 0.0
    %466 = vadd.xlane.f32.xlu0 %v465
    %v467 = vpop.xlane.xlu0 %466
    %v468 = vsel %vm146, %v125, 0.0
    %469 = vadd.xlane.f32.xlu0 %v468
    %v470 = vpop.xlane.xlu0 %469
    %v471 = vsel %vm146, %v126, 0.0
    %472 = vadd.xlane.f32.xlu0 %v471
    %v473 = vpop.xlane.xlu0 %472
    %v474 = vsel %vm146, %v127, 0.0
    %475 = vadd.xlane.f32.xlu0 %v474
    %v476 = vpop.xlane.xlu0 %475
    %v477 = vsel %vm146, %v128, 0.0
    %478 = vadd.xlane.f32.xlu0 %v477
    %v479 = vpop.xlane.xlu0 %478
    %v480 = vsel %vm146, %v129, 0.0
    %481 = vadd.xlane.f32.xlu0 %v480
    %v482 = vpop.xlane.xlu0 %481
    %v483 = vsel %vm146, %v130, 0.0
    %484 = vadd.xlane.f32.xlu0 %v483
    %v485 = vpop.xlane.xlu0 %484
    %v486 = vsel %vm146, %v131, 0.0
    %487 = vadd.xlane.f32.xlu0 %v486
    %v488 = vpop.xlane.xlu0 %487
    %v489 = vsel %vm146, %v132, 0.0
    %490 = vadd.xlane.f32.xlu0 %v489
    %v491 = vpop.xlane.xlu0 %490
    %v492 = vsel %vm146, %v133, 0.0
    %493 = vadd.xlane.f32.xlu0 %v492
    %v494 = vpop.xlane.xlu0 %493
    %v495 = vsel %vm146, %v134, 0.0
    %496 = vadd.xlane.f32.xlu0 %v495
    %v497 = vpop.xlane.xlu0 %496
    %v498 = vsel %vm146, %v135, 0.0
    %499 = vadd.xlane.f32.xlu0 %v498
    %v500 = vpop.xlane.xlu0 %499
    %v501 = vsel %vm146, %v136, 0.0
    %502 = vadd.xlane.f32.xlu0 %v501
    %v503 = vpop.xlane.xlu0 %502
    %v504 = vsel %vm146, %v137, 0.0
    %505 = vadd.xlane.f32.xlu0 %v504
    %v506 = vpop.xlane.xlu0 %505
    %v507 = vsel %vm146, %v138, 0.0
    %508 = vadd.xlane.f32.xlu0 %v507
    %v509 = vpop.xlane.xlu0 %508
    %v510 = vsel %vm146, %v139, 0.0
    %511 = vadd.xlane.f32.xlu0 %v510
    %v512 = vpop.xlane.xlu0 %511
    %v513 = vsel %vm146, %v140, 0.0
    %514 = vadd.xlane.f32.xlu0 %v513
    %v515 = vpop.xlane.xlu0 %514
    %v516 = vsel %vm146, %v141, 0.0
    %517 = vadd.xlane.f32.xlu0 %v516
    %v518 = vpop.xlane.xlu0 %517
    %v519 = vsel %vm146, %v142, 0.0
    %520 = vadd.xlane.f32.xlu0 %v519
    %v521 = vpop.xlane.xlu0 %520
    %v522 = vsel %vm146, %v143, 0.0
    %523 = vadd.xlane.f32.xlu0 %v522
    %v524 = vpop.xlane.xlu0 %523
    %v525 = vsel %vm146, %v144, 0.0
    %526 = vadd.xlane.f32.xlu0 %v525
    %v527 = vpop.xlane.xlu0 %526
    %v528 = vsel %vm146, %v145, 0.0
    %529 = vadd.xlane.f32.xlu0 %v528
    %v530 = vpop.xlane.xlu0 %529
    %v531 = vrcp.pop 64.0
    %v532 = vmul.f32 %v149, %v531
    %v533 = vmul.f32 %v152, %v531
    %v534 = vmul.f32 %v155, %v531
    %v535 = vmul.f32 %v158, %v531
    %v536 = vmul.f32 %v161, %v531
    %v537 = vmul.f32 %v164, %v531
    %v538 = vmul.f32 %v167, %v531
    %v539 = vmul.f32 %v170, %v531
    %v540 = vmul.f32 %v173, %v531
    %v541 = vmul.f32 %v176, %v531
    %v542 = vmul.f32 %v179, %v531
    %v543 = vmul.f32 %v182, %v531
    %v544 = vmul.f32 %v185, %v531
    %v545 = vmul.f32 %v188, %v531
    %v546 = vmul.f32 %v191, %v531
    %v547 = vmul.f32 %v194, %v531
    %v548 = vmul.f32 %v197, %v531
    %v549 = vmul.f32 %v200, %v531
    %v550 = vmul.f32 %v203, %v531
    %v551 = vmul.f32 %v206, %v531
    %v552 = vmul.f32 %v209, %v531
    %v553 = vmul.f32 %v212, %v531
    %v554 = vmul.f32 %v215, %v531
    %v555 = vmul.f32 %v218, %v531
    %v556 = vmul.f32 %v221, %v531
    %v557 = vmul.f32 %v224, %v531
    %v558 = vmul.f32 %v227, %v531
    %v559 = vmul.f32 %v230, %v531
    %v560 = vmul.f32 %v233, %v531
    %v561 = vmul.f32 %v236, %v531
    %v562 = vmul.f32 %v239, %v531
    %v563 = vmul.f32 %v242, %v531
    %v564 = vmul.f32 %v245, %v531
    %v565 = vmul.f32 %v248, %v531
    %v566 = vmul.f32 %v251, %v531
    %v567 = vmul.f32 %v254, %v531
    %v568 = vmul.f32 %v257, %v531
    %v569 = vmul.f32 %v260, %v531
    %v570 = vmul.f32 %v263, %v531
    %v571 = vmul.f32 %v266, %v531
    %v572 = vmul.f32 %v269, %v531
    %v573 = vmul.f32 %v272, %v531
    %v574 = vmul.f32 %v275, %v531
    %v575 = vmul.f32 %v278, %v531
    %v576 = vmul.f32 %v281, %v531
    %v577 = vmul.f32 %v284, %v531
    %v578 = vmul.f32 %v287, %v531
    %v579 = vmul.f32 %v290, %v531
    %v580 = vmul.f32 %v293, %v531
    %v581 = vmul.f32 %v296, %v531
    %v582 = vmul.f32 %v299, %v531
    %v583 = vmul.f32 %v302, %v531
    %v584 = vmul.f32 %v305, %v531
    %v585 = vmul.f32 %v308, %v531
    %v586 = vmul.f32 %v311, %v531
    %v587 = vmul.f32 %v314, %v531
    %v588 = vmul.f32 %v317, %v531
    %v589 = vmul.f32 %v320, %v531
    %v590 = vmul.f32 %v323, %v531
    %v591 = vmul.f32 %v326, %v531
    %v592 = vmul.f32 %v329, %v531
    %v593 = vmul.f32 %v332, %v531
    %v594 = vmul.f32 %v335, %v531
    %v595 = vmul.f32 %v338, %v531
    %v596 = vmul.f32 %v341, %v531
    %v597 = vmul.f32 %v344, %v531
    %v598 = vmul.f32 %v347, %v531
    %v599 = vmul.f32 %v350, %v531
    %v600 = vmul.f32 %v353, %v531
    %v601 = vmul.f32 %v356, %v531
    %v602 = vmul.f32 %v359, %v531
    %v603 = vmul.f32 %v362, %v531
    %v604 = vmul.f32 %v365, %v531
    %v605 = vmul.f32 %v368, %v531
    %v606 = vmul.f32 %v371, %v531
    %v607 = vmul.f32 %v374, %v531
    %v608 = vmul.f32 %v377, %v531
    %v609 = vmul.f32 %v380, %v531
    %v610 = vmul.f32 %v383, %v531
    %v611 = vmul.f32 %v386, %v531
    %v612 = vmul.f32 %v389, %v531
    %v613 = vmul.f32 %v392, %v531
    %v614 = vmul.f32 %v395, %v531
    %v615 = vmul.f32 %v398, %v531
    %v616 = vmul.f32 %v401, %v531
    %v617 = vmul.f32 %v404, %v531
    %v618 = vmul.f32 %v407, %v531
    %v619 = vmul.f32 %v410, %v531
    %v620 = vmul.f32 %v413, %v531
    %v621 = vmul.f32 %v416, %v531
    %v622 = vmul.f32 %v419, %v531
    %v623 = vmul.f32 %v422, %v531
    %v624 = vmul.f32 %v425, %v531
    %v625 = vmul.f32 %v428, %v531
    %v626 = vmul.f32 %v431, %v531
    %v627 = vmul.f32 %v434, %v531
    %v628 = vmul.f32 %v437, %v531
    %v629 = vmul.f32 %v440, %v531
    %v630 = vmul.f32 %v443, %v531
    %v631 = vmul.f32 %v446, %v531
    %v632 = vmul.f32 %v449, %v531
    %v633 = vmul.f32 %v452, %v531
    %v634 = vmul.f32 %v455, %v531
    %v635 = vmul.f32 %v458, %v531
    %v636 = vmul.f32 %v461, %v531
    %v637 = vmul.f32 %v464, %v531
    %v638 = vmul.f32 %v467, %v531
    %v639 = vmul.f32 %v470, %v531
    %v640 = vmul.f32 %v473, %v531
    %v641 = vmul.f32 %v476, %v531
    %v642 = vmul.f32 %v479, %v531
    %v643 = vmul.f32 %v482, %v531
    %v644 = vmul.f32 %v485, %v531
    %v645 = vmul.f32 %v488, %v531
    %v646 = vmul.f32 %v491, %v531
    %v647 = vmul.f32 %v494, %v531
    %v648 = vmul.f32 %v497, %v531
    %v649 = vmul.f32 %v500, %v531
    %v650 = vmul.f32 %v503, %v531
    %v651 = vmul.f32 %v506, %v531
    %v652 = vmul.f32 %v509, %v531
    %v653 = vmul.f32 %v512, %v531
    %v654 = vmul.f32 %v515, %v531
    %v655 = vmul.f32 %v518, %v531
    %v656 = vmul.f32 %v521, %v531
    %v657 = vmul.f32 %v524, %v531
    %v658 = vmul.f32 %v527, %v531
    %v659 = vmul.f32 %v530, %v531
    %v660 = vld [vmem:[%s1] sm:$0xff]
    %v661 = vld [vmem:[%s1 + $0x8] sm:$0xff]
    %v662 = vld [vmem:[%s1 + $0x10] sm:$0xff]
    %v663 = vld [vmem:[%s1 + $0x18] sm:$0xff]
    %v664 = vld [vmem:[%s1 + $0x20] sm:$0xff]
    %v665 = vld [vmem:[%s1 + $0x28] sm:$0xff]
    %v666 = vld [vmem:[%s1 + $0x30] sm:$0xff]
    %v667 = vld [vmem:[%s1 + $0x38] sm:$0xff]
    %v668 = vld [vmem:[%s1 + $0x40] sm:$0xff]
    %v669 = vld [vmem:[%s1 + $0x48] sm:$0xff]
    %v670 = vld [vmem:[%s1 + $0x50] sm:$0xff]
    %v671 = vld [vmem:[%s1 + $0x58] sm:$0xff]
    %v672 = vld [vmem:[%s1 + $0x60] sm:$0xff]
    %v673 = vld [vmem:[%s1 + $0x68] sm:$0xff]
    %v674 = vld [vmem:[%s1 + $0x70] sm:$0xff]
    %v675 = vld [vmem:[%s1 + $0x78] sm:$0xff]
    %v676 = vld [vmem:[%s1 + $0x80] sm:$0xff]
    %v677 = vld [vmem:[%s1 + $0x88] sm:$0xff]
    %v678 = vld [vmem:[%s1 + $0x90] sm:$0xff]
    %v679 = vld [vmem:[%s1 + $0x98] sm:$0xff]
    %v680 = vld [vmem:[%s1 + $0xa0] sm:$0xff]
    %v681 = vld [vmem:[%s1 + $0xa8] sm:$0xff]
    %v682 = vld [vmem:[%s1 + $0xb0] sm:$0xff]
    %v683 = vld [vmem:[%s1 + $0xb8] sm:$0xff]
    %v684 = vld [vmem:[%s1 + $0xc0] sm:$0xff]
    %v685 = vld [vmem:[%s1 + $0xc8] sm:$0xff]
    %v686 = vld [vmem:[%s1 + $0xd0] sm:$0xff]
    %v687 = vld [vmem:[%s1 + $0xd8] sm:$0xff]
    %v688 = vld [vmem:[%s1 + $0xe0] sm:$0xff]
    %v689 = vld [vmem:[%s1 + $0xe8] sm:$0xff]
    %v690 = vld [vmem:[%s1 + $0xf0] sm:$0xff]
    %v691 = vld [vmem:[%s1 + $0xf8] sm:$0xff]
    %v692 = vld [vmem:[%s1 + $0x100] sm:$0xff]
    %v693 = vld [vmem:[%s1 + $0x108] sm:$0xff]
    %v694 = vld [vmem:[%s1 + $0x110] sm:$0xff]
    %v695 = vld [vmem:[%s1 + $0x118] sm:$0xff]
    %v696 = vld [vmem:[%s1 + $0x120] sm:$0xff]
    %v697 = vld [vmem:[%s1 + $0x128] sm:$0xff]
    %v698 = vld [vmem:[%s1 + $0x130] sm:$0xff]
    %v699 = vld [vmem:[%s1 + $0x138] sm:$0xff]
    %v700 = vld [vmem:[%s1 + $0x140] sm:$0xff]
    %v701 = vld [vmem:[%s1 + $0x148] sm:$0xff]
    %v702 = vld [vmem:[%s1 + $0x150] sm:$0xff]
    %v703 = vld [vmem:[%s1 + $0x158] sm:$0xff]
    %v704 = vld [vmem:[%s1 + $0x160] sm:$0xff]
    %v705 = vld [vmem:[%s1 + $0x168] sm:$0xff]
    %v706 = vld [vmem:[%s1 + $0x170] sm:$0xff]
    %v707 = vld [vmem:[%s1 + $0x178] sm:$0xff]
    %v708 = vld [vmem:[%s1 + $0x180] sm:$0xff]
    %v709 = vld [vmem:[%s1 + $0x188] sm:$0xff]
    %v710 = vld [vmem:[%s1 + $0x190] sm:$0xff]
    %v711 = vld [vmem:[%s1 + $0x198] sm:$0xff]
    %v712 = vld [vmem:[%s1 + $0x1a0] sm:$0xff]
    %v713 = vld [vmem:[%s1 + $0x1a8] sm:$0xff]
    %v714 = vld [vmem:[%s1 + $0x1b0] sm:$0xff]
    %v715 = vld [vmem:[%s1 + $0x1b8] sm:$0xff]
    %v716 = vld [vmem:[%s1 + $0x1c0] sm:$0xff]
    %v717 = vld [vmem:[%s1 + $0x1c8] sm:$0xff]
    %v718 = vld [vmem:[%s1 + $0x1d0] sm:$0xff]
    %v719 = vld [vmem:[%s1 + $0x1d8] sm:$0xff]
    %v720 = vld [vmem:[%s1 + $0x1e0] sm:$0xff]
    %v721 = vld [vmem:[%s1 + $0x1e8] sm:$0xff]
    %v722 = vld [vmem:[%s1 + $0x1f0] sm:$0xff]
    %v723 = vld [vmem:[%s1 + $0x1f8] sm:$0xff]
    %v724 = vld [vmem:[%s1 + $0x200] sm:$0xff]
    %v725 = vld [vmem:[%s1 + $0x208] sm:$0xff]
    %v726 = vld [vmem:[%s1 + $0x210] sm:$0xff]
    %v727 = vld [vmem:[%s1 + $0x218] sm:$0xff]
    %v728 = vld [vmem:[%s1 + $0x220] sm:$0xff]
    %v729 = vld [vmem:[%s1 + $0x228] sm:$0xff]
    %v730 = vld [vmem:[%s1 + $0x230] sm:$0xff]
    %v731 = vld [vmem:[%s1 + $0x238] sm:$0xff]
    %v732 = vld [vmem:[%s1 + $0x240] sm:$0xff]
    %v733 = vld [vmem:[%s1 + $0x248] sm:$0xff]
    %v734 = vld [vmem:[%s1 + $0x250] sm:$0xff]
    %v735 = vld [vmem:[%s1 + $0x258] sm:$0xff]
    %v736 = vld [vmem:[%s1 + $0x260] sm:$0xff]
    %v737 = vld [vmem:[%s1 + $0x268] sm:$0xff]
    %v738 = vld [vmem:[%s1 + $0x270] sm:$0xff]
    %v739 = vld [vmem:[%s1 + $0x278] sm:$0xff]
    %v740 = vld [vmem:[%s1 + $0x280] sm:$0xff]
    %v741 = vld [vmem:[%s1 + $0x288] sm:$0xff]
    %v742 = vld [vmem:[%s1 + $0x290] sm:$0xff]
    %v743 = vld [vmem:[%s1 + $0x298] sm:$0xff]
    %v744 = vld [vmem:[%s1 + $0x2a0] sm:$0xff]
    %v745 = vld [vmem:[%s1 + $0x2a8] sm:$0xff]
    %v746 = vld [vmem:[%s1 + $0x2b0] sm:$0xff]
    %v747 = vld [vmem:[%s1 + $0x2b8] sm:$0xff]
    %v748 = vld [vmem:[%s1 + $0x2c0] sm:$0xff]
    %v749 = vld [vmem:[%s1 + $0x2c8] sm:$0xff]
    %v750 = vld [vmem:[%s1 + $0x2d0] sm:$0xff]
    %v751 = vld [vmem:[%s1 + $0x2d8] sm:$0xff]
    %v752 = vld [vmem:[%s1 + $0x2e0] sm:$0xff]
    %v753 = vld [vmem:[%s1 + $0x2e8] sm:$0xff]
    %v754 = vld [vmem:[%s1 + $0x2f0] sm:$0xff]
    %v755 = vld [vmem:[%s1 + $0x2f8] sm:$0xff]
    %v756 = vld [vmem:[%s1 + $0x300] sm:$0xff]
    %v757 = vld [vmem:[%s1 + $0x308] sm:$0xff]
    %v758 = vld [vmem:[%s1 + $0x310] sm:$0xff]
    %v759 = vld [vmem:[%s1 + $0x318] sm:$0xff]
    %v760 = vld [vmem:[%s1 + $0x320] sm:$0xff]
    %v761 = vld [vmem:[%s1 + $0x328] sm:$0xff]
    %v762 = vld [vmem:[%s1 + $0x330] sm:$0xff]
    %v763 = vld [vmem:[%s1 + $0x338] sm:$0xff]
    %v764 = vld [vmem:[%s1 + $0x340] sm:$0xff]
    %v765 = vld [vmem:[%s1 + $0x348] sm:$0xff]
    %v766 = vld [vmem:[%s1 + $0x350] sm:$0xff]
    %v767 = vld [vmem:[%s1 + $0x358] sm:$0xff]
    %v768 = vld [vmem:[%s1 + $0x360] sm:$0xff]
    %v769 = vld [vmem:[%s1 + $0x368] sm:$0xff]
    %v770 = vld [vmem:[%s1 + $0x370] sm:$0xff]
    %v771 = vld [vmem:[%s1 + $0x378] sm:$0xff]
    %v772 = vld [vmem:[%s1 + $0x380] sm:$0xff]
    %v773 = vld [vmem:[%s1 + $0x388] sm:$0xff]
    %v774 = vld [vmem:[%s1 + $0x390] sm:$0xff]
    %v775 = vld [vmem:[%s1 + $0x398] sm:$0xff]
    %v776 = vld [vmem:[%s1 + $0x3a0] sm:$0xff]
    %v777 = vld [vmem:[%s1 + $0x3a8] sm:$0xff]
    %v778 = vld [vmem:[%s1 + $0x3b0] sm:$0xff]
    %v779 = vld [vmem:[%s1 + $0x3b8] sm:$0xff]
    %v780 = vld [vmem:[%s1 + $0x3c0] sm:$0xff]
    %v781 = vld [vmem:[%s1 + $0x3c8] sm:$0xff]
    %v782 = vld [vmem:[%s1 + $0x3d0] sm:$0xff]
    %v783 = vld [vmem:[%s1 + $0x3d8] sm:$0xff]
    %v784 = vld [vmem:[%s1 + $0x3e0] sm:$0xff]
    %v785 = vld [vmem:[%s1 + $0x3e8] sm:$0xff]
    %v786 = vld [vmem:[%s1 + $0x3f0] sm:$0xff]
    %v787 = vld [vmem:[%s1 + $0x3f8] sm:$0xff]
    %v788 = vsel %vm146, %v660, 0.0
    %789 = vadd.xlane.f32.xlu0 %v788
    %v790 = vpop.xlane.xlu0 %789
    %v791 = vsel %vm146, %v661, 0.0
    %792 = vadd.xlane.f32.xlu0 %v791
    %v793 = vpop.xlane.xlu0 %792
    %v794 = vsel %vm146, %v662, 0.0
    %795 = vadd.xlane.f32.xlu0 %v794
    %v796 = vpop.xlane.xlu0 %795
    %v797 = vsel %vm146, %v663, 0.0
    %798 = vadd.xlane.f32.xlu0 %v797
    %v799 = vpop.xlane.xlu0 %798
    %v800 = vsel %vm146, %v664, 0.0
    %801 = vadd.xlane.f32.xlu0 %v800
    %v802 = vpop.xlane.xlu0 %801
    %v803 = vsel %vm146, %v665, 0.0
    %804 = vadd.xlane.f32.xlu0 %v803
    %v805 = vpop.xlane.xlu0 %804
    %v806 = vsel %vm146, %v666, 0.0
    %807 = vadd.xlane.f32.xlu0 %v806
    %v808 = vpop.xlane.xlu0 %807
    %v809 = vsel %vm146, %v667, 0.0
    %810 = vadd.xlane.f32.xlu0 %v809
    %v811 = vpop.xlane.xlu0 %810
    %v812 = vsel %vm146, %v668, 0.0
    %813 = vadd.xlane.f32.xlu0 %v812
    %v814 = vpop.xlane.xlu0 %813
    %v815 = vsel %vm146, %v669, 0.0
    %816 = vadd.xlane.f32.xlu0 %v815
    %v817 = vpop.xlane.xlu0 %816
    %v818 = vsel %vm146, %v670, 0.0
    %819 = vadd.xlane.f32.xlu0 %v818
    %v820 = vpop.xlane.xlu0 %819
    %v821 = vsel %vm146, %v671, 0.0
    %822 = vadd.xlane.f32.xlu0 %v821
    %v823 = vpop.xlane.xlu0 %822
    %v824 = vsel %vm146, %v672, 0.0
    %825 = vadd.xlane.f32.xlu0 %v824
    %v826 = vpop.xlane.xlu0 %825
    %v827 = vsel %vm146, %v673, 0.0
    %828 = vadd.xlane.f32.xlu0 %v827
    %v829 = vpop.xlane.xlu0 %828
    %v830 = vsel %vm146, %v674, 0.0
    %831 = vadd.xlane.f32.xlu0 %v830
    %v832 = vpop.xlane.xlu0 %831
    %v833 = vsel %vm146, %v675, 0.0
    %834 = vadd.xlane.f32.xlu0 %v833
    %v835 = vpop.xlane.xlu0 %834
    %v836 = vsel %vm146, %v676, 0.0
    %837 = vadd.xlane.f32.xlu0 %v836
    %v838 = vpop.xlane.xlu0 %837
    %v839 = vsel %vm146, %v677, 0.0
    %840 = vadd.xlane.f32.xlu0 %v839
    %v841 = vpop.xlane.xlu0 %840
    %v842 = vsel %vm146, %v678, 0.0
    %843 = vadd.xlane.f32.xlu0 %v842
    %v844 = vpop.xlane.xlu0 %843
    %v845 = vsel %vm146, %v679, 0.0
    %846 = vadd.xlane.f32.xlu0 %v845
    %v847 = vpop.xlane.xlu0 %846
    %v848 = vsel %vm146, %v680, 0.0
    %849 = vadd.xlane.f32.xlu0 %v848
    %v850 = vpop.xlane.xlu0 %849
    %v851 = vsel %vm146, %v681, 0.0
    %852 = vadd.xlane.f32.xlu0 %v851
    %v853 = vpop.xlane.xlu0 %852
    %v854 = vsel %vm146, %v682, 0.0
    %855 = vadd.xlane.f32.xlu0 %v854
    %v856 = vpop.xlane.xlu0 %855
    %v857 = vsel %vm146, %v683, 0.0
    %858 = vadd.xlane.f32.xlu0 %v857
    %v859 = vpop.xlane.xlu0 %858
    %v860 = vsel %vm146, %v684, 0.0
    %861 = vadd.xlane.f32.xlu0 %v860
    %v862 = vpop.xlane.xlu0 %861
    %v863 = vsel %vm146, %v685, 0.0
    %864 = vadd.xlane.f32.xlu0 %v863
    %v865 = vpop.xlane.xlu0 %864
    %v866 = vsel %vm146, %v686, 0.0
    %867 = vadd.xlane.f32.xlu0 %v866
    %v868 = vpop.xlane.xlu0 %867
    %v869 = vsel %vm146, %v687, 0.0
    %870 = vadd.xlane.f32.xlu0 %v869
    %v871 = vpop.xlane.xlu0 %870
    %v872 = vsel %vm146, %v688, 0.0
    %873 = vadd.xlane.f32.xlu0 %v872
    %v874 = vpop.xlane.xlu0 %873
    %v875 = vsel %vm146, %v689, 0.0
    %876 = vadd.xlane.f32.xlu0 %v875
    %v877 = vpop.xlane.xlu0 %876
    %v878 = vsel %vm146, %v690, 0.0
    %879 = vadd.xlane.f32.xlu0 %v878
    %v880 = vpop.xlane.xlu0 %879
    %v881 = vsel %vm146, %v691, 0.0
    %882 = vadd.xlane.f32.xlu0 %v881
    %v883 = vpop.xlane.xlu0 %882
    %v884 = vsel %vm146, %v692, 0.0
    %885 = vadd.xlane.f32.xlu0 %v884
    %v886 = vpop.xlane.xlu0 %885
    %v887 = vsel %vm146, %v693, 0.0
    %888 = vadd.xlane.f32.xlu0 %v887
    %v889 = vpop.xlane.xlu0 %888
    %v890 = vsel %vm146, %v694, 0.0
    %891 = vadd.xlane.f32.xlu0 %v890
    %v892 = vpop.xlane.xlu0 %891
    %v893 = vsel %vm146, %v695, 0.0
    %894 = vadd.xlane.f32.xlu0 %v893
    %v895 = vpop.xlane.xlu0 %894
    %v896 = vsel %vm146, %v696, 0.0
    %897 = vadd.xlane.f32.xlu0 %v896
    %v898 = vpop.xlane.xlu0 %897
    %v899 = vsel %vm146, %v697, 0.0
    %900 = vadd.xlane.f32.xlu0 %v899
    %v901 = vpop.xlane.xlu0 %900
    %v902 = vsel %vm146, %v698, 0.0
    %903 = vadd.xlane.f32.xlu0 %v902
    %v904 = vpop.xlane.xlu0 %903
    %v905 = vsel %vm146, %v699, 0.0
    %906 = vadd.xlane.f32.xlu0 %v905
    %v907 = vpop.xlane.xlu0 %906
    %v908 = vsel %vm146, %v700, 0.0
    %909 = vadd.xlane.f32.xlu0 %v908
    %v910 = vpop.xlane.xlu0 %909
    %v911 = vsel %vm146, %v701, 0.0
    %912 = vadd.xlane.f32.xlu0 %v911
    %v913 = vpop.xlane.xlu0 %912
    %v914 = vsel %vm146, %v702, 0.0
    %915 = vadd.xlane.f32.xlu0 %v914
    %v916 = vpop.xlane.xlu0 %915
    %v917 = vsel %vm146, %v703, 0.0
    %918 = vadd.xlane.f32.xlu0 %v917
    %v919 = vpop.xlane.xlu0 %918
    %v920 = vsel %vm146, %v704, 0.0
    %921 = vadd.xlane.f32.xlu0 %v920
    %v922 = vpop.xlane.xlu0 %921
    %v923 = vsel %vm146, %v705, 0.0
    %924 = vadd.xlane.f32.xlu0 %v923
    %v925 = vpop.xlane.xlu0 %924
    %v926 = vsel %vm146, %v706, 0.0
    %927 = vadd.xlane.f32.xlu0 %v926
    %v928 = vpop.xlane.xlu0 %927
    %v929 = vsel %vm146, %v707, 0.0
    %930 = vadd.xlane.f32.xlu0 %v929
    %v931 = vpop.xlane.xlu0 %930
    %v932 = vsel %vm146, %v708, 0.0
    %933 = vadd.xlane.f32.xlu0 %v932
    %v934 = vpop.xlane.xlu0 %933
    %v935 = vsel %vm146, %v709, 0.0
    %936 = vadd.xlane.f32.xlu0 %v935
    %v937 = vpop.xlane.xlu0 %936
    %v938 = vsel %vm146, %v710, 0.0
    %939 = vadd.xlane.f32.xlu0 %v938
    %v940 = vpop.xlane.xlu0 %939
    %v941 = vsel %vm146, %v711, 0.0
    %942 = vadd.xlane.f32.xlu0 %v941
    %v943 = vpop.xlane.xlu0 %942
    %v944 = vsel %vm146, %v712, 0.0
    %945 = vadd.xlane.f32.xlu0 %v944
    %v946 = vpop.xlane.xlu0 %945
    %v947 = vsel %vm146, %v713, 0.0
    %948 = vadd.xlane.f32.xlu0 %v947
    %v949 = vpop.xlane.xlu0 %948
    %v950 = vsel %vm146, %v714, 0.0
    %951 = vadd.xlane.f32.xlu0 %v950
    %v952 = vpop.xlane.xlu0 %951
    %v953 = vsel %vm146, %v715, 0.0
    %954 = vadd.xlane.f32.xlu0 %v953
    %v955 = vpop.xlane.xlu0 %954
    %v956 = vsel %vm146, %v716, 0.0
    %957 = vadd.xlane.f32.xlu0 %v956
    %v958 = vpop.xlane.xlu0 %957
    %v959 = vsel %vm146, %v717, 0.0
    %960 = vadd.xlane.f32.xlu0 %v959
    %v961 = vpop.xlane.xlu0 %960
    %v962 = vsel %vm146, %v718, 0.0
    %963 = vadd.xlane.f32.xlu0 %v962
    %v964 = vpop.xlane.xlu0 %963
    %v965 = vsel %vm146, %v719, 0.0
    %966 = vadd.xlane.f32.xlu0 %v965
    %v967 = vpop.xlane.xlu0 %966
    %v968 = vsel %vm146, %v720, 0.0
    %969 = vadd.xlane.f32.xlu0 %v968
    %v970 = vpop.xlane.xlu0 %969
    %v971 = vsel %vm146, %v721, 0.0
    %972 = vadd.xlane.f32.xlu0 %v971
    %v973 = vpop.xlane.xlu0 %972
    %v974 = vsel %vm146, %v722, 0.0
    %975 = vadd.xlane.f32.xlu0 %v974
    %v976 = vpop.xlane.xlu0 %975
    %v977 = vsel %vm146, %v723, 0.0
    %978 = vadd.xlane.f32.xlu0 %v977
    %v979 = vpop.xlane.xlu0 %978
    %v980 = vsel %vm146, %v724, 0.0
    %981 = vadd.xlane.f32.xlu0 %v980
    %v982 = vpop.xlane.xlu0 %981
    %v983 = vsel %vm146, %v725, 0.0
    %984 = vadd.xlane.f32.xlu0 %v983
    %v985 = vpop.xlane.xlu0 %984
    %v986 = vsel %vm146, %v726, 0.0
    %987 = vadd.xlane.f32.xlu0 %v986
    %v988 = vpop.xlane.xlu0 %987
    %v989 = vsel %vm146, %v727, 0.0
    %990 = vadd.xlane.f32.xlu0 %v989
    %v991 = vpop.xlane.xlu0 %990
    %v992 = vsel %vm146, %v728, 0.0
    %993 = vadd.xlane.f32.xlu0 %v992
    %v994 = vpop.xlane.xlu0 %993
    %v995 = vsel %vm146, %v729, 0.0
    %996 = vadd.xlane.f32.xlu0 %v995
    %v997 = vpop.xlane.xlu0 %996
    %v998 = vsel %vm146, %v730, 0.0
    %999 = vadd.xlane.f32.xlu0 %v998
    %v1000 = vpop.xlane.xlu0 %999
    %v1001 = vsel %vm146, %v731, 0.0
    %1002 = vadd.xlane.f32.xlu0 %v1001
    %v1003 = vpop.xlane.xlu0 %1002
    %v1004 = vsel %vm146, %v732, 0.0
    %1005 = vadd.xlane.f32.xlu0 %v1004
    %v1006 = vpop.xlane.xlu0 %1005
    %v1007 = vsel %vm146, %v733, 0.0
    %1008 = vadd.xlane.f32.xlu0 %v1007
    %v1009 = vpop.xlane.xlu0 %1008
    %v1010 = vsel %vm146, %v734, 0.0
    %1011 = vadd.xlane.f32.xlu0 %v1010
    %v1012 = vpop.xlane.xlu0 %1011
    %v1013 = vsel %vm146, %v735, 0.0
    %1014 = vadd.xlane.f32.xlu0 %v1013
    %v1015 = vpop.xlane.xlu0 %1014
    %v1016 = vsel %vm146, %v736, 0.0
    %1017 = vadd.xlane.f32.xlu0 %v1016
    %v1018 = vpop.xlane.xlu0 %1017
    %v1019 = vsel %vm146, %v737, 0.0
    %1020 = vadd.xlane.f32.xlu0 %v1019
    %v1021 = vpop.xlane.xlu0 %1020
    %v1022 = vsel %vm146, %v738, 0.0
    %1023 = vadd.xlane.f32.xlu0 %v1022
    %v1024 = vpop.xlane.xlu0 %1023
    %v1025 = vsel %vm146, %v739, 0.0
    %1026 = vadd.xlane.f32.xlu0 %v1025
    %v1027 = vpop.xlane.xlu0 %1026
    %v1028 = vsel %vm146, %v740, 0.0
    %1029 = vadd.xlane.f32.xlu0 %v1028
    %v1030 = vpop.xlane.xlu0 %1029
    %v1031 = vsel %vm146, %v741, 0.0
    %1032 = vadd.xlane.f32.xlu0 %v1031
    %v1033 = vpop.xlane.xlu0 %1032
    %v1034 = vsel %vm146, %v742, 0.0
    %1035 = vadd.xlane.f32.xlu0 %v1034
    %v1036 = vpop.xlane.xlu0 %1035
    %v1037 = vsel %vm146, %v743, 0.0
    %1038 = vadd.xlane.f32.xlu0 %v1037
    %v1039 = vpop.xlane.xlu0 %1038
    %v1040 = vsel %vm146, %v744, 0.0
    %1041 = vadd.xlane.f32.xlu0 %v1040
    %v1042 = vpop.xlane.xlu0 %1041
    %v1043 = vsel %vm146, %v745, 0.0
    %1044 = vadd.xlane.f32.xlu0 %v1043
    %v1045 = vpop.xlane.xlu0 %1044
    %v1046 = vsel %vm146, %v746, 0.0
    %1047 = vadd.xlane.f32.xlu0 %v1046
    %v1048 = vpop.xlane.xlu0 %1047
    %v1049 = vsel %vm146, %v747, 0.0
    %1050 = vadd.xlane.f32.xlu0 %v1049
    %v1051 = vpop.xlane.xlu0 %1050
    %v1052 = vsel %vm146, %v748, 0.0
    %1053 = vadd.xlane.f32.xlu0 %v1052
    %v1054 = vpop.xlane.xlu0 %1053
    %v1055 = vsel %vm146, %v749, 0.0
    %1056 = vadd.xlane.f32.xlu0 %v1055
    %v1057 = vpop.xlane.xlu0 %1056
    %v1058 = vsel %vm146, %v750, 0.0
    %1059 = vadd.xlane.f32.xlu0 %v1058
    %v1060 = vpop.xlane.xlu0 %1059
    %v1061 = vsel %vm146, %v751, 0.0
    %1062 = vadd.xlane.f32.xlu0 %v1061
    %v1063 = vpop.xlane.xlu0 %1062
    %v1064 = vsel %vm146, %v752, 0.0
    %1065 = vadd.xlane.f32.xlu0 %v1064
    %v1066 = vpop.xlane.xlu0 %1065
    %v1067 = vsel %vm146, %v753, 0.0
    %1068 = vadd.xlane.f32.xlu0 %v1067
    %v1069 = vpop.xlane.xlu0 %1068
    %v1070 = vsel %vm146, %v754, 0.0
    %1071 = vadd.xlane.f32.xlu0 %v1070
    %v1072 = vpop.xlane.xlu0 %1071
    %v1073 = vsel %vm146, %v755, 0.0
    %1074 = vadd.xlane.f32.xlu0 %v1073
    %v1075 = vpop.xlane.xlu0 %1074
    %v1076 = vsel %vm146, %v756, 0.0
    %1077 = vadd.xlane.f32.xlu0 %v1076
    %v1078 = vpop.xlane.xlu0 %1077
    %v1079 = vsel %vm146, %v757, 0.0
    %1080 = vadd.xlane.f32.xlu0 %v1079
    %v1081 = vpop.xlane.xlu0 %1080
    %v1082 = vsel %vm146, %v758, 0.0
    %1083 = vadd.xlane.f32.xlu0 %v1082
    %v1084 = vpop.xlane.xlu0 %1083
    %v1085 = vsel %vm146, %v759, 0.0
    %1086 = vadd.xlane.f32.xlu0 %v1085
    %v1087 = vpop.xlane.xlu0 %1086
    %v1088 = vsel %vm146, %v760, 0.0
    %1089 = vadd.xlane.f32.xlu0 %v1088
    %v1090 = vpop.xlane.xlu0 %1089
    %v1091 = vsel %vm146, %v761, 0.0
    %1092 = vadd.xlane.f32.xlu0 %v1091
    %v1093 = vpop.xlane.xlu0 %1092
    %v1094 = vsel %vm146, %v762, 0.0
    %1095 = vadd.xlane.f32.xlu0 %v1094
    %v1096 = vpop.xlane.xlu0 %1095
    %v1097 = vsel %vm146, %v763, 0.0
    %1098 = vadd.xlane.f32.xlu0 %v1097
    %v1099 = vpop.xlane.xlu0 %1098
    %v1100 = vsel %vm146, %v764, 0.0
    %1101 = vadd.xlane.f32.xlu0 %v1100
    %v1102 = vpop.xlane.xlu0 %1101
    %v1103 = vsel %vm146, %v765, 0.0
    %1104 = vadd.xlane.f32.xlu0 %v1103
    %v1105 = vpop.xlane.xlu0 %1104
    %v1106 = vsel %vm146, %v766, 0.0
    %1107 = vadd.xlane.f32.xlu0 %v1106
    %v1108 = vpop.xlane.xlu0 %1107
    %v1109 = vsel %vm146, %v767, 0.0
    %1110 = vadd.xlane.f32.xlu0 %v1109
    %v1111 = vpop.xlane.xlu0 %1110
    %v1112 = vsel %vm146, %v768, 0.0
    %1113 = vadd.xlane.f32.xlu0 %v1112
    %v1114 = vpop.xlane.xlu0 %1113
    %v1115 = vsel %vm146, %v769, 0.0
    %1116 = vadd.xlane.f32.xlu0 %v1115
    %v1117 = vpop.xlane.xlu0 %1116
    %v1118 = vsel %vm146, %v770, 0.0
    %1119 = vadd.xlane.f32.xlu0 %v1118
    %v1120 = vpop.xlane.xlu0 %1119
    %v1121 = vsel %vm146, %v771, 0.0
    %1122 = vadd.xlane.f32.xlu0 %v1121
    %v1123 = vpop.xlane.xlu0 %1122
    %v1124 = vsel %vm146, %v772, 0.0
    %1125 = vadd.xlane.f32.xlu0 %v1124
    %v1126 = vpop.xlane.xlu0 %1125
    %v1127 = vsel %vm146, %v773, 0.0
    %1128 = vadd.xlane.f32.xlu0 %v1127
    %v1129 = vpop.xlane.xlu0 %1128
    %v1130 = vsel %vm146, %v774, 0.0
    %1131 = vadd.xlane.f32.xlu0 %v1130
    %v1132 = vpop.xlane.xlu0 %1131
    %v1133 = vsel %vm146, %v775, 0.0
    %1134 = vadd.xlane.f32.xlu0 %v1133
    %v1135 = vpop.xlane.xlu0 %1134
    %v1136 = vsel %vm146, %v776, 0.0
    %1137 = vadd.xlane.f32.xlu0 %v1136
    %v1138 = vpop.xlane.xlu0 %1137
    %v1139 = vsel %vm146, %v777, 0.0
    %1140 = vadd.xlane.f32.xlu0 %v1139
    %v1141 = vpop.xlane.xlu0 %1140
    %v1142 = vsel %vm146, %v778, 0.0
    %1143 = vadd.xlane.f32.xlu0 %v1142
    %v1144 = vpop.xlane.xlu0 %1143
    %v1145 = vsel %vm146, %v779, 0.0
    %1146 = vadd.xlane.f32.xlu0 %v1145
    %v1147 = vpop.xlane.xlu0 %1146
    %v1148 = vsel %vm146, %v780, 0.0
    %1149 = vadd.xlane.f32.xlu0 %v1148
    %v1150 = vpop.xlane.xlu0 %1149
    %v1151 = vsel %vm146, %v781, 0.0
    %1152 = vadd.xlane.f32.xlu0 %v1151
    %v1153 = vpop.xlane.xlu0 %1152
    %v1154 = vsel %vm146, %v782, 0.0
    %1155 = vadd.xlane.f32.xlu0 %v1154
    %v1156 = vpop.xlane.xlu0 %1155
    %v1157 = vsel %vm146, %v783, 0.0
    %1158 = vadd.xlane.f32.xlu0 %v1157
    %v1159 = vpop.xlane.xlu0 %1158
    %v1160 = vsel %vm146, %v784, 0.0
    %1161 = vadd.xlane.f32.xlu0 %v1160
    %v1162 = vpop.xlane.xlu0 %1161
    %v1163 = vsel %vm146, %v785, 0.0
    %1164 = vadd.xlane.f32.xlu0 %v1163
    %v1165 = vpop.xlane.xlu0 %1164
    %v1166 = vsel %vm146, %v786, 0.0
    %1167 = vadd.xlane.f32.xlu0 %v1166
    %v1168 = vpop.xlane.xlu0 %1167
    %v1169 = vsel %vm146, %v787, 0.0
    %1170 = vadd.xlane.f32.xlu0 %v1169
    %v1171 = vpop.xlane.xlu0 %1170
    %v1172 = vmul.f32 %v790, %v531
    %v1173 = vmul.f32 %v793, %v531
    %v1174 = vmul.f32 %v796, %v531
    %v1175 = vmul.f32 %v799, %v531
    %v1176 = vmul.f32 %v802, %v531
    %v1177 = vmul.f32 %v805, %v531
    %v1178 = vmul.f32 %v808, %v531
    %v1179 = vmul.f32 %v811, %v531
    %v1180 = vmul.f32 %v814, %v531
    %v1181 = vmul.f32 %v817, %v531
    %v1182 = vmul.f32 %v820, %v531
    %v1183 = vmul.f32 %v823, %v531
    %v1184 = vmul.f32 %v826, %v531
    %v1185 = vmul.f32 %v829, %v531
    %v1186 = vmul.f32 %v832, %v531
    %v1187 = vmul.f32 %v835, %v531
    %v1188 = vmul.f32 %v838, %v531
    %v1189 = vmul.f32 %v841, %v531
    %v1190 = vmul.f32 %v844, %v531
    %v1191 = vmul.f32 %v847, %v531
    %v1192 = vmul.f32 %v850, %v531
    %v1193 = vmul.f32 %v853, %v531
    %v1194 = vmul.f32 %v856, %v531
    %v1195 = vmul.f32 %v859, %v531
    %v1196 = vmul.f32 %v862, %v531
    %v1197 = vmul.f32 %v865, %v531
    %v1198 = vmul.f32 %v868, %v531
    %v1199 = vmul.f32 %v871, %v531
    %v1200 = vmul.f32 %v874, %v531
    %v1201 = vmul.f32 %v877, %v531
    %v1202 = vmul.f32 %v880, %v531
    %v1203 = vmul.f32 %v883, %v531
    %v1204 = vmul.f32 %v886, %v531
    %v1205 = vmul.f32 %v889, %v531
    %v1206 = vmul.f32 %v892, %v531
    %v1207 = vmul.f32 %v895, %v531
    %v1208 = vmul.f32 %v898, %v531
    %v1209 = vmul.f32 %v901, %v531
    %v1210 = vmul.f32 %v904, %v531
    %v1211 = vmul.f32 %v907, %v531
    %v1212 = vmul.f32 %v910, %v531
    %v1213 = vmul.f32 %v913, %v531
    %v1214 = vmul.f32 %v916, %v531
    %v1215 = vmul.f32 %v919, %v531
    %v1216 = vmul.f32 %v922, %v531
    %v1217 = vmul.f32 %v925, %v531
    %v1218 = vmul.f32 %v928, %v531
    %v1219 = vmul.f32 %v931, %v531
    %v1220 = vmul.f32 %v934, %v531
    %v1221 = vmul.f32 %v937, %v531
    %v1222 = vmul.f32 %v940, %v531
    %v1223 = vmul.f32 %v943, %v531
    %v1224 = vmul.f32 %v946, %v531
    %v1225 = vmul.f32 %v949, %v531
    %v1226 = vmul.f32 %v952, %v531
    %v1227 = vmul.f32 %v955, %v531
    %v1228 = vmul.f32 %v958, %v531
    %v1229 = vmul.f32 %v961, %v531
    %v1230 = vmul.f32 %v964, %v531
    %v1231 = vmul.f32 %v967, %v531
    %v1232 = vmul.f32 %v970, %v531
    %v1233 = vmul.f32 %v973, %v531
    %v1234 = vmul.f32 %v976, %v531
    %v1235 = vmul.f32 %v979, %v531
    %v1236 = vmul.f32 %v982, %v531
    %v1237 = vmul.f32 %v985, %v531
    %v1238 = vmul.f32 %v988, %v531
    %v1239 = vmul.f32 %v991, %v531
    %v1240 = vmul.f32 %v994, %v531
    %v1241 = vmul.f32 %v997, %v531
    %v1242 = vmul.f32 %v1000, %v531
    %v1243 = vmul.f32 %v1003, %v531
    %v1244 = vmul.f32 %v1006, %v531
    %v1245 = vmul.f32 %v1009, %v531
    %v1246 = vmul.f32 %v1012, %v531
    %v1247 = vmul.f32 %v1015, %v531
    %v1248 = vmul.f32 %v1018, %v531
    %v1249 = vmul.f32 %v1021, %v531
    %v1250 = vmul.f32 %v1024, %v531
    %v1251 = vmul.f32 %v1027, %v531
    %v1252 = vmul.f32 %v1030, %v531
    %v1253 = vmul.f32 %v1033, %v531
    %v1254 = vmul.f32 %v1036, %v531
    %v1255 = vmul.f32 %v1039, %v531
    %v1256 = vmul.f32 %v1042, %v531
    %v1257 = vmul.f32 %v1045, %v531
    %v1258 = vmul.f32 %v1048, %v531
    %v1259 = vmul.f32 %v1051, %v531
    %v1260 = vmul.f32 %v1054, %v531
    %v1261 = vmul.f32 %v1057, %v531
    %v1262 = vmul.f32 %v1060, %v531
    %v1263 = vmul.f32 %v1063, %v531
    %v1264 = vmul.f32 %v1066, %v531
    %v1265 = vmul.f32 %v1069, %v531
    %v1266 = vmul.f32 %v1072, %v531
    %v1267 = vmul.f32 %v1075, %v531
    %v1268 = vmul.f32 %v1078, %v531
    %v1269 = vmul.f32 %v1081, %v531
    %v1270 = vmul.f32 %v1084, %v531
    %v1271 = vmul.f32 %v1087, %v531
    %v1272 = vmul.f32 %v1090, %v531
    %v1273 = vmul.f32 %v1093, %v531
    %v1274 = vmul.f32 %v1096, %v531
    %v1275 = vmul.f32 %v1099, %v531
    %v1276 = vmul.f32 %v1102, %v531
    %v1277 = vmul.f32 %v1105, %v531
    %v1278 = vmul.f32 %v1108, %v531
    %v1279 = vmul.f32 %v1111, %v531
    %v1280 = vmul.f32 %v1114, %v531
    %v1281 = vmul.f32 %v1117, %v531
    %v1282 = vmul.f32 %v1120, %v531
    %v1283 = vmul.f32 %v1123, %v531
    %v1284 = vmul.f32 %v1126, %v531
    %v1285 = vmul.f32 %v1129, %v531
    %v1286 = vmul.f32 %v1132, %v531
    %v1287 = vmul.f32 %v1135, %v531
    %v1288 = vmul.f32 %v1138, %v531
    %v1289 = vmul.f32 %v1141, %v531
    %v1290 = vmul.f32 %v1144, %v531
    %v1291 = vmul.f32 %v1147, %v531
    %v1292 = vmul.f32 %v1150, %v531
    %v1293 = vmul.f32 %v1153, %v531
    %v1294 = vmul.f32 %v1156, %v531
    %v1295 = vmul.f32 %v1159, %v531
    %v1296 = vmul.f32 %v1162, %v531
    %v1297 = vmul.f32 %v1165, %v531
    %v1298 = vmul.f32 %v1168, %v531
    %v1299 = vmul.f32 %v1171, %v531
    %v1428 = vlaneseq
    %v1429 = vand.u32 %v1428, 127
    %v1430 = vlaneseq
    %v1431 = vshrl.u32 %v1430, 7
    %v1432 = vsub.s32 %v1429, %v1431
    %v1433 = vrot.slane %v532, %v1432
    %v1434 = vadd.s32 %v1429, 4294967288
    %v1435 = vlaneseq
    %v1436 = vshrl.u32 %v1435, 7
    %v1437 = vsub.s32 %v1434, %v1436
    %v1438 = vrot.slane %v533, %v1437
    %vm1439 = vcmask 130112
    %v1440 = vsel %vm1439, %v1438, %v1433
    %v1441 = vadd.s32 %v1429, 4294967280
    %v1442 = vlaneseq
    %v1443 = vshrl.u32 %v1442, 7
    %v1444 = vsub.s32 %v1441, %v1443
    %v1445 = vrot.slane %v534, %v1444
    %vm1446 = vcmask 195712
    %v1447 = vsel %vm1446, %v1445, %v1440
    %v1448 = vadd.s32 %v1429, 4294967272
    %v1449 = vlaneseq
    %v1450 = vshrl.u32 %v1449, 7
    %v1451 = vsub.s32 %v1448, %v1450
    %v1452 = vrot.slane %v535, %v1451
    %vm1453 = vcmask 261312
    %v1454 = vsel %vm1453, %v1452, %v1447
    %v1455 = vadd.s32 %v1429, 4294967264
    %v1456 = vlaneseq
    %v1457 = vshrl.u32 %v1456, 7
    %v1458 = vsub.s32 %v1455, %v1457
    %v1459 = vrot.slane %v536, %v1458
    %vm1460 = vcmask 326912
    %v1461 = vsel %vm1460, %v1459, %v1454
    %v1462 = vadd.s32 %v1429, 4294967256
    %v1463 = vlaneseq
    %v1464 = vshrl.u32 %v1463, 7
    %v1465 = vsub.s32 %v1462, %v1464
    %v1466 = vrot.slane %v537, %v1465
    %vm1467 = vcmask 392512
    %v1468 = vsel %vm1467, %v1466, %v1461
    %v1469 = vadd.s32 %v1429, 4294967248
    %v1470 = vlaneseq
    %v1471 = vshrl.u32 %v1470, 7
    %v1472 = vsub.s32 %v1469, %v1471
    %v1473 = vrot.slane %v538, %v1472
    %vm1474 = vcmask 458112
    %v1475 = vsel %vm1474, %v1473, %v1468
    %v1476 = vadd.s32 %v1429, 4294967240
    %v1477 = vlaneseq
    %v1478 = vshrl.u32 %v1477, 7
    %v1479 = vsub.s32 %v1476, %v1478
    %v1480 = vrot.slane %v539, %v1479
    %vm1481 = vcmask 523712
    %v1482 = vsel %vm1481, %v1480, %v1475
    %v1483 = vadd.s32 %v1429, 4294967232
    %v1484 = vlaneseq
    %v1485 = vshrl.u32 %v1484, 7
    %v1486 = vsub.s32 %v1483, %v1485
    %v1487 = vrot.slane %v540, %v1486
    %vm1488 = vcmask 589312
    %v1489 = vsel %vm1488, %v1487, %v1482
    %v1490 = vadd.s32 %v1429, 4294967224
    %v1491 = vlaneseq
    %v1492 = vshrl.u32 %v1491, 7
    %v1493 = vsub.s32 %v1490, %v1492
    %v1494 = vrot.slane %v541, %v1493
    %vm1495 = vcmask 654912
    %v1496 = vsel %vm1495, %v1494, %v1489
    %v1497 = vadd.s32 %v1429, 4294967216
    %v1498 = vlaneseq
    %v1499 = vshrl.u32 %v1498, 7
    %v1500 = vsub.s32 %v1497, %v1499
    %v1501 = vrot.slane %v542, %v1500
    %vm1502 = vcmask 720512
    %v1503 = vsel %vm1502, %v1501, %v1496
    %v1504 = vadd.s32 %v1429, 4294967208
    %v1505 = vlaneseq
    %v1506 = vshrl.u32 %v1505, 7
    %v1507 = vsub.s32 %v1504, %v1506
    %v1508 = vrot.slane %v543, %v1507
    %vm1509 = vcmask 786112
    %v1510 = vsel %vm1509, %v1508, %v1503
    %v1511 = vadd.s32 %v1429, 4294967200
    %v1512 = vlaneseq
    %v1513 = vshrl.u32 %v1512, 7
    %v1514 = vsub.s32 %v1511, %v1513
    %v1515 = vrot.slane %v544, %v1514
    %vm1516 = vcmask 851712
    %v1517 = vsel %vm1516, %v1515, %v1510
    %v1518 = vadd.s32 %v1429, 4294967192
    %v1519 = vlaneseq
    %v1520 = vshrl.u32 %v1519, 7
    %v1521 = vsub.s32 %v1518, %v1520
    %v1522 = vrot.slane %v545, %v1521
    %vm1523 = vcmask 917312
    %v1524 = vsel %vm1523, %v1522, %v1517
    %v1525 = vadd.s32 %v1429, 4294967184
    %v1526 = vlaneseq
    %v1527 = vshrl.u32 %v1526, 7
    %v1528 = vsub.s32 %v1525, %v1527
    %v1529 = vrot.slane %v546, %v1528
    %vm1530 = vcmask 982912
    %v1531 = vsel %vm1530, %v1529, %v1524
    %v1532 = vadd.s32 %v1429, 4294967176
    %v1533 = vlaneseq
    %v1534 = vshrl.u32 %v1533, 7
    %v1535 = vsub.s32 %v1532, %v1534
    %v1536 = vrot.slane %v547, %v1535
    %vm1537 = vcmask 1048512
    %v1538 = vsel %vm1537, %v1536, %v1531
    %v1539 = vlaneseq
    %v1540 = vshrl.u32 %v1539, 7
    %v1541 = vsub.s32 %v1429, %v1540
    %v1542 = vrot.slane %v548, %v1541
    %v1543 = vlaneseq
    %v1544 = vshrl.u32 %v1543, 7
    %v1545 = vsub.s32 %v1434, %v1544
    %v1546 = vrot.slane %v549, %v1545
    %v1547 = vsel %vm1439, %v1546, %v1542
    %v1548 = vlaneseq
    %v1549 = vshrl.u32 %v1548, 7
    %v1550 = vsub.s32 %v1441, %v1549
    %v1551 = vrot.slane %v550, %v1550
    %v1552 = vsel %vm1446, %v1551, %v1547
    %v1553 = vlaneseq
    %v1554 = vshrl.u32 %v1553, 7
    %v1555 = vsub.s32 %v1448, %v1554
    %v1556 = vrot.slane %v551, %v1555
    %v1557 = vsel %vm1453, %v1556, %v1552
    %v1558 = vlaneseq
    %v1559 = vshrl.u32 %v1558, 7
    %v1560 = vsub.s32 %v1455, %v1559
    %v1561 = vrot.slane %v552, %v1560
    %v1562 = vsel %vm1460, %v1561, %v1557
    %v1563 = vlaneseq
    %v1564 = vshrl.u32 %v1563, 7
    %v1565 = vsub.s32 %v1462, %v1564
    %v1566 = vrot.slane %v553, %v1565
    %v1567 = vsel %vm1467, %v1566, %v1562
    %v1568 = vlaneseq
    %v1569 = vshrl.u32 %v1568, 7
    %v1570 = vsub.s32 %v1469, %v1569
    %v1571 = vrot.slane %v554, %v1570
    %v1572 = vsel %vm1474, %v1571, %v1567
    %v1573 = vlaneseq
    %v1574 = vshrl.u32 %v1573, 7
    %v1575 = vsub.s32 %v1476, %v1574
    %v1576 = vrot.slane %v555, %v1575
    %v1577 = vsel %vm1481, %v1576, %v1572
    %v1578 = vlaneseq
    %v1579 = vshrl.u32 %v1578, 7
    %v1580 = vsub.s32 %v1483, %v1579
    %v1581 = vrot.slane %v556, %v1580
    %v1582 = vsel %vm1488, %v1581, %v1577
    %v1583 = vlaneseq
    %v1584 = vshrl.u32 %v1583, 7
    %v1585 = vsub.s32 %v1490, %v1584
    %v1586 = vrot.slane %v557, %v1585
    %v1587 = vsel %vm1495, %v1586, %v1582
    %v1588 = vlaneseq
    %v1589 = vshrl.u32 %v1588, 7
    %v1590 = vsub.s32 %v1497, %v1589
    %v1591 = vrot.slane %v558, %v1590
    %v1592 = vsel %vm1502, %v1591, %v1587
    %v1593 = vlaneseq
    %v1594 = vshrl.u32 %v1593, 7
    %v1595 = vsub.s32 %v1504, %v1594
    %v1596 = vrot.slane %v559, %v1595
    %v1597 = vsel %vm1509, %v1596, %v1592
    %v1598 = vlaneseq
    %v1599 = vshrl.u32 %v1598, 7
    %v1600 = vsub.s32 %v1511, %v1599
    %v1601 = vrot.slane %v560, %v1600
    %v1602 = vsel %vm1516, %v1601, %v1597
    %v1603 = vlaneseq
    %v1604 = vshrl.u32 %v1603, 7
    %v1605 = vsub.s32 %v1518, %v1604
    %v1606 = vrot.slane %v561, %v1605
    %v1607 = vsel %vm1523, %v1606, %v1602
    %v1608 = vlaneseq
    %v1609 = vshrl.u32 %v1608, 7
    %v1610 = vsub.s32 %v1525, %v1609
    %v1611 = vrot.slane %v562, %v1610
    %v1612 = vsel %vm1530, %v1611, %v1607
    %v1613 = vlaneseq
    %v1614 = vshrl.u32 %v1613, 7
    %v1615 = vsub.s32 %v1532, %v1614
    %v1616 = vrot.slane %v563, %v1615
    %v1617 = vsel %vm1537, %v1616, %v1612
    %v1618 = vlaneseq
    %v1619 = vshrl.u32 %v1618, 7
    %v1620 = vsub.s32 %v1429, %v1619
    %v1621 = vrot.slane %v564, %v1620
    %v1622 = vlaneseq
    %v1623 = vshrl.u32 %v1622, 7
    %v1624 = vsub.s32 %v1434, %v1623
    %v1625 = vrot.slane %v565, %v1624
    %v1626 = vsel %vm1439, %v1625, %v1621
    %v1627 = vlaneseq
    %v1628 = vshrl.u32 %v1627, 7
    %v1629 = vsub.s32 %v1441, %v1628
    %v1630 = vrot.slane %v566, %v1629
    %v1631 = vsel %vm1446, %v1630, %v1626
    %v1632 = vlaneseq
    %v1633 = vshrl.u32 %v1632, 7
    %v1634 = vsub.s32 %v1448, %v1633
    %v1635 = vrot.slane %v567, %v1634
    %v1636 = vsel %vm1453, %v1635, %v1631
    %v1637 = vlaneseq
    %v1638 = vshrl.u32 %v1637, 7
    %v1639 = vsub.s32 %v1455, %v1638
    %v1640 = vrot.slane %v568, %v1639
    %v1641 = vsel %vm1460, %v1640, %v1636
    %v1642 = vlaneseq
    %v1643 = vshrl.u32 %v1642, 7
    %v1644 = vsub.s32 %v1462, %v1643
    %v1645 = vrot.slane %v569, %v1644
    %v1646 = vsel %vm1467, %v1645, %v1641
    %v1647 = vlaneseq
    %v1648 = vshrl.u32 %v1647, 7
    %v1649 = vsub.s32 %v1469, %v1648
    %v1650 = vrot.slane %v570, %v1649
    %v1651 = vsel %vm1474, %v1650, %v1646
    %v1652 = vlaneseq
    %v1653 = vshrl.u32 %v1652, 7
    %v1654 = vsub.s32 %v1476, %v1653
    %v1655 = vrot.slane %v571, %v1654
    %v1656 = vsel %vm1481, %v1655, %v1651
    %v1657 = vlaneseq
    %v1658 = vshrl.u32 %v1657, 7
    %v1659 = vsub.s32 %v1483, %v1658
    %v1660 = vrot.slane %v572, %v1659
    %v1661 = vsel %vm1488, %v1660, %v1656
    %v1662 = vlaneseq
    %v1663 = vshrl.u32 %v1662, 7
    %v1664 = vsub.s32 %v1490, %v1663
    %v1665 = vrot.slane %v573, %v1664
    %v1666 = vsel %vm1495, %v1665, %v1661
    %v1667 = vlaneseq
    %v1668 = vshrl.u32 %v1667, 7
    %v1669 = vsub.s32 %v1497, %v1668
    %v1670 = vrot.slane %v574, %v1669
    %v1671 = vsel %vm1502, %v1670, %v1666
    %v1672 = vlaneseq
    %v1673 = vshrl.u32 %v1672, 7
    %v1674 = vsub.s32 %v1504, %v1673
    %v1675 = vrot.slane %v575, %v1674
    %v1676 = vsel %vm1509, %v1675, %v1671
    %v1677 = vlaneseq
    %v1678 = vshrl.u32 %v1677, 7
    %v1679 = vsub.s32 %v1511, %v1678
    %v1680 = vrot.slane %v576, %v1679
    %v1681 = vsel %vm1516, %v1680, %v1676
    %v1682 = vlaneseq
    %v1683 = vshrl.u32 %v1682, 7
    %v1684 = vsub.s32 %v1518, %v1683
    %v1685 = vrot.slane %v577, %v1684
    %v1686 = vsel %vm1523, %v1685, %v1681
    %v1687 = vlaneseq
    %v1688 = vshrl.u32 %v1687, 7
    %v1689 = vsub.s32 %v1525, %v1688
    %v1690 = vrot.slane %v578, %v1689
    %v1691 = vsel %vm1530, %v1690, %v1686
    %v1692 = vlaneseq
    %v1693 = vshrl.u32 %v1692, 7
    %v1694 = vsub.s32 %v1532, %v1693
    %v1695 = vrot.slane %v579, %v1694
    %v1696 = vsel %vm1537, %v1695, %v1691
    %v1697 = vlaneseq
    %v1698 = vshrl.u32 %v1697, 7
    %v1699 = vsub.s32 %v1429, %v1698
    %v1700 = vrot.slane %v580, %v1699
    %v1701 = vlaneseq
    %v1702 = vshrl.u32 %v1701, 7
    %v1703 = vsub.s32 %v1434, %v1702
    %v1704 = vrot.slane %v581, %v1703
    %v1705 = vsel %vm1439, %v1704, %v1700
    %v1706 = vlaneseq
    %v1707 = vshrl.u32 %v1706, 7
    %v1708 = vsub.s32 %v1441, %v1707
    %v1709 = vrot.slane %v582, %v1708
    %v1710 = vsel %vm1446, %v1709, %v1705
    %v1711 = vlaneseq
    %v1712 = vshrl.u32 %v1711, 7
    %v1713 = vsub.s32 %v1448, %v1712
    %v1714 = vrot.slane %v583, %v1713
    %v1715 = vsel %vm1453, %v1714, %v1710
    %v1716 = vlaneseq
    %v1717 = vshrl.u32 %v1716, 7
    %v1718 = vsub.s32 %v1455, %v1717
    %v1719 = vrot.slane %v584, %v1718
    %v1720 = vsel %vm1460, %v1719, %v1715
    %v1721 = vlaneseq
    %v1722 = vshrl.u32 %v1721, 7
    %v1723 = vsub.s32 %v1462, %v1722
    %v1724 = vrot.slane %v585, %v1723
    %v1725 = vsel %vm1467, %v1724, %v1720
    %v1726 = vlaneseq
    %v1727 = vshrl.u32 %v1726, 7
    %v1728 = vsub.s32 %v1469, %v1727
    %v1729 = vrot.slane %v586, %v1728
    %v1730 = vsel %vm1474, %v1729, %v1725
    %v1731 = vlaneseq
    %v1732 = vshrl.u32 %v1731, 7
    %v1733 = vsub.s32 %v1476, %v1732
    %v1734 = vrot.slane %v587, %v1733
    %v1735 = vsel %vm1481, %v1734, %v1730
    %v1736 = vlaneseq
    %v1737 = vshrl.u32 %v1736, 7
    %v1738 = vsub.s32 %v1483, %v1737
    %v1739 = vrot.slane %v588, %v1738
    %v1740 = vsel %vm1488, %v1739, %v1735
    %v1741 = vlaneseq
    %v1742 = vshrl.u32 %v1741, 7
    %v1743 = vsub.s32 %v1490, %v1742
    %v1744 = vrot.slane %v589, %v1743
    %v1745 = vsel %vm1495, %v1744, %v1740
    %v1746 = vlaneseq
    %v1747 = vshrl.u32 %v1746, 7
    %v1748 = vsub.s32 %v1497, %v1747
    %v1749 = vrot.slane %v590, %v1748
    %v1750 = vsel %vm1502, %v1749, %v1745
    %v1751 = vlaneseq
    %v1752 = vshrl.u32 %v1751, 7
    %v1753 = vsub.s32 %v1504, %v1752
    %v1754 = vrot.slane %v591, %v1753
    %v1755 = vsel %vm1509, %v1754, %v1750
    %v1756 = vlaneseq
    %v1757 = vshrl.u32 %v1756, 7
    %v1758 = vsub.s32 %v1511, %v1757
    %v1759 = vrot.slane %v592, %v1758
    %v1760 = vsel %vm1516, %v1759, %v1755
    %v1761 = vlaneseq
    %v1762 = vshrl.u32 %v1761, 7
    %v1763 = vsub.s32 %v1518, %v1762
    %v1764 = vrot.slane %v593, %v1763
    %v1765 = vsel %vm1523, %v1764, %v1760
    %v1766 = vlaneseq
    %v1767 = vshrl.u32 %v1766, 7
    %v1768 = vsub.s32 %v1525, %v1767
    %v1769 = vrot.slane %v594, %v1768
    %v1770 = vsel %vm1530, %v1769, %v1765
    %v1771 = vlaneseq
    %v1772 = vshrl.u32 %v1771, 7
    %v1773 = vsub.s32 %v1532, %v1772
    %v1774 = vrot.slane %v595, %v1773
    %v1775 = vsel %vm1537, %v1774, %v1770
    %v1776 = vlaneseq
    %v1777 = vshrl.u32 %v1776, 7
    %v1778 = vsub.s32 %v1429, %v1777
    %v1779 = vrot.slane %v596, %v1778
    %v1780 = vlaneseq
    %v1781 = vshrl.u32 %v1780, 7
    %v1782 = vsub.s32 %v1434, %v1781
    %v1783 = vrot.slane %v597, %v1782
    %v1784 = vsel %vm1439, %v1783, %v1779
    %v1785 = vlaneseq
    %v1786 = vshrl.u32 %v1785, 7
    %v1787 = vsub.s32 %v1441, %v1786
    %v1788 = vrot.slane %v598, %v1787
    %v1789 = vsel %vm1446, %v1788, %v1784
    %v1790 = vlaneseq
    %v1791 = vshrl.u32 %v1790, 7
    %v1792 = vsub.s32 %v1448, %v1791
    %v1793 = vrot.slane %v599, %v1792
    %v1794 = vsel %vm1453, %v1793, %v1789
    %v1795 = vlaneseq
    %v1796 = vshrl.u32 %v1795, 7
    %v1797 = vsub.s32 %v1455, %v1796
    %v1798 = vrot.slane %v600, %v1797
    %v1799 = vsel %vm1460, %v1798, %v1794
    %v1800 = vlaneseq
    %v1801 = vshrl.u32 %v1800, 7
    %v1802 = vsub.s32 %v1462, %v1801
    %v1803 = vrot.slane %v601, %v1802
    %v1804 = vsel %vm1467, %v1803, %v1799
    %v1805 = vlaneseq
    %v1806 = vshrl.u32 %v1805, 7
    %v1807 = vsub.s32 %v1469, %v1806
    %v1808 = vrot.slane %v602, %v1807
    %v1809 = vsel %vm1474, %v1808, %v1804
    %v1810 = vlaneseq
    %v1811 = vshrl.u32 %v1810, 7
    %v1812 = vsub.s32 %v1476, %v1811
    %v1813 = vrot.slane %v603, %v1812
    %v1814 = vsel %vm1481, %v1813, %v1809
    %v1815 = vlaneseq
    %v1816 = vshrl.u32 %v1815, 7
    %v1817 = vsub.s32 %v1483, %v1816
    %v1818 = vrot.slane %v604, %v1817
    %v1819 = vsel %vm1488, %v1818, %v1814
    %v1820 = vlaneseq
    %v1821 = vshrl.u32 %v1820, 7
    %v1822 = vsub.s32 %v1490, %v1821
    %v1823 = vrot.slane %v605, %v1822
    %v1824 = vsel %vm1495, %v1823, %v1819
    %v1825 = vlaneseq
    %v1826 = vshrl.u32 %v1825, 7
    %v1827 = vsub.s32 %v1497, %v1826
    %v1828 = vrot.slane %v606, %v1827
    %v1829 = vsel %vm1502, %v1828, %v1824
    %v1830 = vlaneseq
    %v1831 = vshrl.u32 %v1830, 7
    %v1832 = vsub.s32 %v1504, %v1831
    %v1833 = vrot.slane %v607, %v1832
    %v1834 = vsel %vm1509, %v1833, %v1829
    %v1835 = vlaneseq
    %v1836 = vshrl.u32 %v1835, 7
    %v1837 = vsub.s32 %v1511, %v1836
    %v1838 = vrot.slane %v608, %v1837
    %v1839 = vsel %vm1516, %v1838, %v1834
    %v1840 = vlaneseq
    %v1841 = vshrl.u32 %v1840, 7
    %v1842 = vsub.s32 %v1518, %v1841
    %v1843 = vrot.slane %v609, %v1842
    %v1844 = vsel %vm1523, %v1843, %v1839
    %v1845 = vlaneseq
    %v1846 = vshrl.u32 %v1845, 7
    %v1847 = vsub.s32 %v1525, %v1846
    %v1848 = vrot.slane %v610, %v1847
    %v1849 = vsel %vm1530, %v1848, %v1844
    %v1850 = vlaneseq
    %v1851 = vshrl.u32 %v1850, 7
    %v1852 = vsub.s32 %v1532, %v1851
    %v1853 = vrot.slane %v611, %v1852
    %v1854 = vsel %vm1537, %v1853, %v1849
    %v1855 = vlaneseq
    %v1856 = vshrl.u32 %v1855, 7
    %v1857 = vsub.s32 %v1429, %v1856
    %v1858 = vrot.slane %v612, %v1857
    %v1859 = vlaneseq
    %v1860 = vshrl.u32 %v1859, 7
    %v1861 = vsub.s32 %v1434, %v1860
    %v1862 = vrot.slane %v613, %v1861
    %v1863 = vsel %vm1439, %v1862, %v1858
    %v1864 = vlaneseq
    %v1865 = vshrl.u32 %v1864, 7
    %v1866 = vsub.s32 %v1441, %v1865
    %v1867 = vrot.slane %v614, %v1866
    %v1868 = vsel %vm1446, %v1867, %v1863
    %v1869 = vlaneseq
    %v1870 = vshrl.u32 %v1869, 7
    %v1871 = vsub.s32 %v1448, %v1870
    %v1872 = vrot.slane %v615, %v1871
    %v1873 = vsel %vm1453, %v1872, %v1868
    %v1874 = vlaneseq
    %v1875 = vshrl.u32 %v1874, 7
    %v1876 = vsub.s32 %v1455, %v1875
    %v1877 = vrot.slane %v616, %v1876
    %v1878 = vsel %vm1460, %v1877, %v1873
    %v1879 = vlaneseq
    %v1880 = vshrl.u32 %v1879, 7
    %v1881 = vsub.s32 %v1462, %v1880
    %v1882 = vrot.slane %v617, %v1881
    %v1883 = vsel %vm1467, %v1882, %v1878
    %v1884 = vlaneseq
    %v1885 = vshrl.u32 %v1884, 7
    %v1886 = vsub.s32 %v1469, %v1885
    %v1887 = vrot.slane %v618, %v1886
    %v1888 = vsel %vm1474, %v1887, %v1883
    %v1889 = vlaneseq
    %v1890 = vshrl.u32 %v1889, 7
    %v1891 = vsub.s32 %v1476, %v1890
    %v1892 = vrot.slane %v619, %v1891
    %v1893 = vsel %vm1481, %v1892, %v1888
    %v1894 = vlaneseq
    %v1895 = vshrl.u32 %v1894, 7
    %v1896 = vsub.s32 %v1483, %v1895
    %v1897 = vrot.slane %v620, %v1896
    %v1898 = vsel %vm1488, %v1897, %v1893
    %v1899 = vlaneseq
    %v1900 = vshrl.u32 %v1899, 7
    %v1901 = vsub.s32 %v1490, %v1900
    %v1902 = vrot.slane %v621, %v1901
    %v1903 = vsel %vm1495, %v1902, %v1898
    %v1904 = vlaneseq
    %v1905 = vshrl.u32 %v1904, 7
    %v1906 = vsub.s32 %v1497, %v1905
    %v1907 = vrot.slane %v622, %v1906
    %v1908 = vsel %vm1502, %v1907, %v1903
    %v1909 = vlaneseq
    %v1910 = vshrl.u32 %v1909, 7
    %v1911 = vsub.s32 %v1504, %v1910
    %v1912 = vrot.slane %v623, %v1911
    %v1913 = vsel %vm1509, %v1912, %v1908
    %v1914 = vlaneseq
    %v1915 = vshrl.u32 %v1914, 7
    %v1916 = vsub.s32 %v1511, %v1915
    %v1917 = vrot.slane %v624, %v1916
    %v1918 = vsel %vm1516, %v1917, %v1913
    %v1919 = vlaneseq
    %v1920 = vshrl.u32 %v1919, 7
    %v1921 = vsub.s32 %v1518, %v1920
    %v1922 = vrot.slane %v625, %v1921
    %v1923 = vsel %vm1523, %v1922, %v1918
    %v1924 = vlaneseq
    %v1925 = vshrl.u32 %v1924, 7
    %v1926 = vsub.s32 %v1525, %v1925
    %v1927 = vrot.slane %v626, %v1926
    %v1928 = vsel %vm1530, %v1927, %v1923
    %v1929 = vlaneseq
    %v1930 = vshrl.u32 %v1929, 7
    %v1931 = vsub.s32 %v1532, %v1930
    %v1932 = vrot.slane %v627, %v1931
    %v1933 = vsel %vm1537, %v1932, %v1928
    %v1934 = vlaneseq
    %v1935 = vshrl.u32 %v1934, 7
    %v1936 = vsub.s32 %v1429, %v1935
    %v1937 = vrot.slane %v628, %v1936
    %v1938 = vlaneseq
    %v1939 = vshrl.u32 %v1938, 7
    %v1940 = vsub.s32 %v1434, %v1939
    %v1941 = vrot.slane %v629, %v1940
    %v1942 = vsel %vm1439, %v1941, %v1937
    %v1943 = vlaneseq
    %v1944 = vshrl.u32 %v1943, 7
    %v1945 = vsub.s32 %v1441, %v1944
    %v1946 = vrot.slane %v630, %v1945
    %v1947 = vsel %vm1446, %v1946, %v1942
    %v1948 = vlaneseq
    %v1949 = vshrl.u32 %v1948, 7
    %v1950 = vsub.s32 %v1448, %v1949
    %v1951 = vrot.slane %v631, %v1950
    %v1952 = vsel %vm1453, %v1951, %v1947
    %v1953 = vlaneseq
    %v1954 = vshrl.u32 %v1953, 7
    %v1955 = vsub.s32 %v1455, %v1954
    %v1956 = vrot.slane %v632, %v1955
    %v1957 = vsel %vm1460, %v1956, %v1952
    %v1958 = vlaneseq
    %v1959 = vshrl.u32 %v1958, 7
    %v1960 = vsub.s32 %v1462, %v1959
    %v1961 = vrot.slane %v633, %v1960
    %v1962 = vsel %vm1467, %v1961, %v1957
    %v1963 = vlaneseq
    %v1964 = vshrl.u32 %v1963, 7
    %v1965 = vsub.s32 %v1469, %v1964
    %v1966 = vrot.slane %v634, %v1965
    %v1967 = vsel %vm1474, %v1966, %v1962
    %v1968 = vlaneseq
    %v1969 = vshrl.u32 %v1968, 7
    %v1970 = vsub.s32 %v1476, %v1969
    %v1971 = vrot.slane %v635, %v1970
    %v1972 = vsel %vm1481, %v1971, %v1967
    %v1973 = vlaneseq
    %v1974 = vshrl.u32 %v1973, 7
    %v1975 = vsub.s32 %v1483, %v1974
    %v1976 = vrot.slane %v636, %v1975
    %v1977 = vsel %vm1488, %v1976, %v1972
    %v1978 = vlaneseq
    %v1979 = vshrl.u32 %v1978, 7
    %v1980 = vsub.s32 %v1490, %v1979
    %v1981 = vrot.slane %v637, %v1980
    %v1982 = vsel %vm1495, %v1981, %v1977
    %v1983 = vlaneseq
    %v1984 = vshrl.u32 %v1983, 7
    %v1985 = vsub.s32 %v1497, %v1984
    %v1986 = vrot.slane %v638, %v1985
    %v1987 = vsel %vm1502, %v1986, %v1982
    %v1988 = vlaneseq
    %v1989 = vshrl.u32 %v1988, 7
    %v1990 = vsub.s32 %v1504, %v1989
    %v1991 = vrot.slane %v639, %v1990
    %v1992 = vsel %vm1509, %v1991, %v1987
    %v1993 = vlaneseq
    %v1994 = vshrl.u32 %v1993, 7
    %v1995 = vsub.s32 %v1511, %v1994
    %v1996 = vrot.slane %v640, %v1995
    %v1997 = vsel %vm1516, %v1996, %v1992
    %v1998 = vlaneseq
    %v1999 = vshrl.u32 %v1998, 7
    %v2000 = vsub.s32 %v1518, %v1999
    %v2001 = vrot.slane %v641, %v2000
    %v2002 = vsel %vm1523, %v2001, %v1997
    %v2003 = vlaneseq
    %v2004 = vshrl.u32 %v2003, 7
    %v2005 = vsub.s32 %v1525, %v2004
    %v2006 = vrot.slane %v642, %v2005
    %v2007 = vsel %vm1530, %v2006, %v2002
    %v2008 = vlaneseq
    %v2009 = vshrl.u32 %v2008, 7
    %v2010 = vsub.s32 %v1532, %v2009
    %v2011 = vrot.slane %v643, %v2010
    %v2012 = vsel %vm1537, %v2011, %v2007
    %v2013 = vlaneseq
    %v2014 = vshrl.u32 %v2013, 7
    %v2015 = vsub.s32 %v1429, %v2014
    %v2016 = vrot.slane %v644, %v2015
    %v2017 = vlaneseq
    %v2018 = vshrl.u32 %v2017, 7
    %v2019 = vsub.s32 %v1434, %v2018
    %v2020 = vrot.slane %v645, %v2019
    %v2021 = vsel %vm1439, %v2020, %v2016
    %v2022 = vlaneseq
    %v2023 = vshrl.u32 %v2022, 7
    %v2024 = vsub.s32 %v1441, %v2023
    %v2025 = vrot.slane %v646, %v2024
    %v2026 = vsel %vm1446, %v2025, %v2021
    %v2027 = vlaneseq
    %v2028 = vshrl.u32 %v2027, 7
    %v2029 = vsub.s32 %v1448, %v2028
    %v2030 = vrot.slane %v647, %v2029
    %v2031 = vsel %vm1453, %v2030, %v2026
    %v2032 = vlaneseq
    %v2033 = vshrl.u32 %v2032, 7
    %v2034 = vsub.s32 %v1455, %v2033
    %v2035 = vrot.slane %v648, %v2034
    %v2036 = vsel %vm1460, %v2035, %v2031
    %v2037 = vlaneseq
    %v2038 = vshrl.u32 %v2037, 7
    %v2039 = vsub.s32 %v1462, %v2038
    %v2040 = vrot.slane %v649, %v2039
    %v2041 = vsel %vm1467, %v2040, %v2036
    %v2042 = vlaneseq
    %v2043 = vshrl.u32 %v2042, 7
    %v2044 = vsub.s32 %v1469, %v2043
    %v2045 = vrot.slane %v650, %v2044
    %v2046 = vsel %vm1474, %v2045, %v2041
    %v2047 = vlaneseq
    %v2048 = vshrl.u32 %v2047, 7
    %v2049 = vsub.s32 %v1476, %v2048
    %v2050 = vrot.slane %v651, %v2049
    %v2051 = vsel %vm1481, %v2050, %v2046
    %v2052 = vlaneseq
    %v2053 = vshrl.u32 %v2052, 7
    %v2054 = vsub.s32 %v1483, %v2053
    %v2055 = vrot.slane %v652, %v2054
    %v2056 = vsel %vm1488, %v2055, %v2051
    %v2057 = vlaneseq
    %v2058 = vshrl.u32 %v2057, 7
    %v2059 = vsub.s32 %v1490, %v2058
    %v2060 = vrot.slane %v653, %v2059
    %v2061 = vsel %vm1495, %v2060, %v2056
    %v2062 = vlaneseq
    %v2063 = vshrl.u32 %v2062, 7
    %v2064 = vsub.s32 %v1497, %v2063
    %v2065 = vrot.slane %v654, %v2064
    %v2066 = vsel %vm1502, %v2065, %v2061
    %v2067 = vlaneseq
    %v2068 = vshrl.u32 %v2067, 7
    %v2069 = vsub.s32 %v1504, %v2068
    %v2070 = vrot.slane %v655, %v2069
    %v2071 = vsel %vm1509, %v2070, %v2066
    %v2072 = vlaneseq
    %v2073 = vshrl.u32 %v2072, 7
    %v2074 = vsub.s32 %v1511, %v2073
    %v2075 = vrot.slane %v656, %v2074
    %v2076 = vsel %vm1516, %v2075, %v2071
    %v2077 = vlaneseq
    %v2078 = vshrl.u32 %v2077, 7
    %v2079 = vsub.s32 %v1518, %v2078
    %v2080 = vrot.slane %v657, %v2079
    %v2081 = vsel %vm1523, %v2080, %v2076
    %v2082 = vlaneseq
    %v2083 = vshrl.u32 %v2082, 7
    %v2084 = vsub.s32 %v1525, %v2083
    %v2085 = vrot.slane %v658, %v2084
    %v2086 = vsel %vm1530, %v2085, %v2081
    %v2087 = vlaneseq
    %v2088 = vshrl.u32 %v2087, 7
    %v2089 = vsub.s32 %v1532, %v2088
    %v2090 = vrot.slane %v659, %v2089
    %v2091 = vsel %vm1537, %v2090, %v2086
    %vm2092 = vcmask 1041409
    %v2093 = vsel %vm2092, %v1854, %v1538
    %v2094 = vsel %vm2092, %v1933, %v1617
    %v2095 = vsel %vm2092, %v2012, %v1696
    %v2096 = vsel %vm2092, %v2091, %v1775
    %v2229 = vlaneseq
    %v2230 = vshrl.u32 %v2229, 7
    %v2231 = vsub.s32 %v1429, %v2230
    %v2232 = vrot.slane %v1172, %v2231
    %v2233 = vlaneseq
    %v2234 = vshrl.u32 %v2233, 7
    %v2235 = vsub.s32 %v1434, %v2234
    %v2236 = vrot.slane %v1173, %v2235
    %v2237 = vsel %vm1439, %v2236, %v2232
    %v2238 = vlaneseq
    %v2239 = vshrl.u32 %v2238, 7
    %v2240 = vsub.s32 %v1441, %v2239
    %v2241 = vrot.slane %v1174, %v2240
    %v2242 = vsel %vm1446, %v2241, %v2237
    %v2243 = vlaneseq
    %v2244 = vshrl.u32 %v2243, 7
    %v2245 = vsub.s32 %v1448, %v2244
    %v2246 = vrot.slane %v1175, %v2245
    %v2247 = vsel %vm1453, %v2246, %v2242
    %v2248 = vlaneseq
    %v2249 = vshrl.u32 %v2248, 7
    %v2250 = vsub.s32 %v1455, %v2249
    %v2251 = vrot.slane %v1176, %v2250
    %v2252 = vsel %vm1460, %v2251, %v2247
    %v2253 = vlaneseq
    %v2254 = vshrl.u32 %v2253, 7
    %v2255 = vsub.s32 %v1462, %v2254
    %v2256 = vrot.slane %v1177, %v2255
    %v2257 = vsel %vm1467, %v2256, %v2252
    %v2258 = vlaneseq
    %v2259 = vshrl.u32 %v2258, 7
    %v2260 = vsub.s32 %v1469, %v2259
    %v2261 = vrot.slane %v1178, %v2260
    %v2262 = vsel %vm1474, %v2261, %v2257
    %v2263 = vlaneseq
    %v2264 = vshrl.u32 %v2263, 7
    %v2265 = vsub.s32 %v1476, %v2264
    %v2266 = vrot.slane %v1179, %v2265
    %v2267 = vsel %vm1481, %v2266, %v2262
    %v2268 = vlaneseq
    %v2269 = vshrl.u32 %v2268, 7
    %v2270 = vsub.s32 %v1483, %v2269
    %v2271 = vrot.slane %v1180, %v2270
    %v2272 = vsel %vm1488, %v2271, %v2267
    %v2273 = vlaneseq
    %v2274 = vshrl.u32 %v2273, 7
    %v2275 = vsub.s32 %v1490, %v2274
    %v2276 = vrot.slane %v1181, %v2275
    %v2277 = vsel %vm1495, %v2276, %v2272
    %v2278 = vlaneseq
    %v2279 = vshrl.u32 %v2278, 7
    %v2280 = vsub.s32 %v1497, %v2279
    %v2281 = vrot.slane %v1182, %v2280
    %v2282 = vsel %vm1502, %v2281, %v2277
    %v2283 = vlaneseq
    %v2284 = vshrl.u32 %v2283, 7
    %v2285 = vsub.s32 %v1504, %v2284
    %v2286 = vrot.slane %v1183, %v2285
    %v2287 = vsel %vm1509, %v2286, %v2282
    %v2288 = vlaneseq
    %v2289 = vshrl.u32 %v2288, 7
    %v2290 = vsub.s32 %v1511, %v2289
    %v2291 = vrot.slane %v1184, %v2290
    %v2292 = vsel %vm1516, %v2291, %v2287
    %v2293 = vlaneseq
    %v2294 = vshrl.u32 %v2293, 7
    %v2295 = vsub.s32 %v1518, %v2294
    %v2296 = vrot.slane %v1185, %v2295
    %v2297 = vsel %vm1523, %v2296, %v2292
    %v2298 = vlaneseq
    %v2299 = vshrl.u32 %v2298, 7
    %v2300 = vsub.s32 %v1525, %v2299
    %v2301 = vrot.slane %v1186, %v2300
    %v2302 = vsel %vm1530, %v2301, %v2297
    %v2303 = vlaneseq
    %v2304 = vshrl.u32 %v2303, 7
    %v2305 = vsub.s32 %v1532, %v2304
    %v2306 = vrot.slane %v1187, %v2305
    %v2307 = vsel %vm1537, %v2306, %v2302
    %v2308 = vlaneseq
    %v2309 = vshrl.u32 %v2308, 7
    %v2310 = vsub.s32 %v1429, %v2309
    %v2311 = vrot.slane %v1188, %v2310
    %v2312 = vlaneseq
    %v2313 = vshrl.u32 %v2312, 7
    %v2314 = vsub.s32 %v1434, %v2313
    %v2315 = vrot.slane %v1189, %v2314
    %v2316 = vsel %vm1439, %v2315, %v2311
    %v2317 = vlaneseq
    %v2318 = vshrl.u32 %v2317, 7
    %v2319 = vsub.s32 %v1441, %v2318
    %v2320 = vrot.slane %v1190, %v2319
    %v2321 = vsel %vm1446, %v2320, %v2316
    %v2322 = vlaneseq
    %v2323 = vshrl.u32 %v2322, 7
    %v2324 = vsub.s32 %v1448, %v2323
    %v2325 = vrot.slane %v1191, %v2324
    %v2326 = vsel %vm1453, %v2325, %v2321
    %v2327 = vlaneseq
    %v2328 = vshrl.u32 %v2327, 7
    %v2329 = vsub.s32 %v1455, %v2328
    %v2330 = vrot.slane %v1192, %v2329
    %v2331 = vsel %vm1460, %v2330, %v2326
    %v2332 = vlaneseq
    %v2333 = vshrl.u32 %v2332, 7
    %v2334 = vsub.s32 %v1462, %v2333
    %v2335 = vrot.slane %v1193, %v2334
    %v2336 = vsel %vm1467, %v2335, %v2331
    %v2337 = vlaneseq
    %v2338 = vshrl.u32 %v2337, 7
    %v2339 = vsub.s32 %v1469, %v2338
    %v2340 = vrot.slane %v1194, %v2339
    %v2341 = vsel %vm1474, %v2340, %v2336
    %v2342 = vlaneseq
    %v2343 = vshrl.u32 %v2342, 7
    %v2344 = vsub.s32 %v1476, %v2343
    %v2345 = vrot.slane %v1195, %v2344
    %v2346 = vsel %vm1481, %v2345, %v2341
    %v2347 = vlaneseq
    %v2348 = vshrl.u32 %v2347, 7
    %v2349 = vsub.s32 %v1483, %v2348
    %v2350 = vrot.slane %v1196, %v2349
    %v2351 = vsel %vm1488, %v2350, %v2346
    %v2352 = vlaneseq
    %v2353 = vshrl.u32 %v2352, 7
    %v2354 = vsub.s32 %v1490, %v2353
    %v2355 = vrot.slane %v1197, %v2354
    %v2356 = vsel %vm1495, %v2355, %v2351
    %v2357 = vlaneseq
    %v2358 = vshrl.u32 %v2357, 7
    %v2359 = vsub.s32 %v1497, %v2358
    %v2360 = vrot.slane %v1198, %v2359
    %v2361 = vsel %vm1502, %v2360, %v2356
    %v2362 = vlaneseq
    %v2363 = vshrl.u32 %v2362, 7
    %v2364 = vsub.s32 %v1504, %v2363
    %v2365 = vrot.slane %v1199, %v2364
    %v2366 = vsel %vm1509, %v2365, %v2361
    %v2367 = vlaneseq
    %v2368 = vshrl.u32 %v2367, 7
    %v2369 = vsub.s32 %v1511, %v2368
    %v2370 = vrot.slane %v1200, %v2369
    %v2371 = vsel %vm1516, %v2370, %v2366
    %v2372 = vlaneseq
    %v2373 = vshrl.u32 %v2372, 7
    %v2374 = vsub.s32 %v1518, %v2373
    %v2375 = vrot.slane %v1201, %v2374
    %v2376 = vsel %vm1523, %v2375, %v2371
    %v2377 = vlaneseq
    %v2378 = vshrl.u32 %v2377, 7
    %v2379 = vsub.s32 %v1525, %v2378
    %v2380 = vrot.slane %v1202, %v2379
    %v2381 = vsel %vm1530, %v2380, %v2376
    %v2382 = vlaneseq
    %v2383 = vshrl.u32 %v2382, 7
    %v2384 = vsub.s32 %v1532, %v2383
    %v2385 = vrot.slane %v1203, %v2384
    %v2386 = vsel %vm1537, %v2385, %v2381
    %v2387 = vlaneseq
    %v2388 = vshrl.u32 %v2387, 7
    %v2389 = vsub.s32 %v1429, %v2388
    %v2390 = vrot.slane %v1204, %v2389
    %v2391 = vlaneseq
    %v2392 = vshrl.u32 %v2391, 7
    %v2393 = vsub.s32 %v1434, %v2392
    %v2394 = vrot.slane %v1205, %v2393
    %v2395 = vsel %vm1439, %v2394, %v2390
    %v2396 = vlaneseq
    %v2397 = vshrl.u32 %v2396, 7
    %v2398 = vsub.s32 %v1441, %v2397
    %v2399 = vrot.slane %v1206, %v2398
    %v2400 = vsel %vm1446, %v2399, %v2395
    %v2401 = vlaneseq
    %v2402 = vshrl.u32 %v2401, 7
    %v2403 = vsub.s32 %v1448, %v2402
    %v2404 = vrot.slane %v1207, %v2403
    %v2405 = vsel %vm1453, %v2404, %v2400
    %v2406 = vlaneseq
    %v2407 = vshrl.u32 %v2406, 7
    %v2408 = vsub.s32 %v1455, %v2407
    %v2409 = vrot.slane %v1208, %v2408
    %v2410 = vsel %vm1460, %v2409, %v2405
    %v2411 = vlaneseq
    %v2412 = vshrl.u32 %v2411, 7
    %v2413 = vsub.s32 %v1462, %v2412
    %v2414 = vrot.slane %v1209, %v2413
    %v2415 = vsel %vm1467, %v2414, %v2410
    %v2416 = vlaneseq
    %v2417 = vshrl.u32 %v2416, 7
    %v2418 = vsub.s32 %v1469, %v2417
    %v2419 = vrot.slane %v1210, %v2418
    %v2420 = vsel %vm1474, %v2419, %v2415
    %v2421 = vlaneseq
    %v2422 = vshrl.u32 %v2421, 7
    %v2423 = vsub.s32 %v1476, %v2422
    %v2424 = vrot.slane %v1211, %v2423
    %v2425 = vsel %vm1481, %v2424, %v2420
    %v2426 = vlaneseq
    %v2427 = vshrl.u32 %v2426, 7
    %v2428 = vsub.s32 %v1483, %v2427
    %v2429 = vrot.slane %v1212, %v2428
    %v2430 = vsel %vm1488, %v2429, %v2425
    %v2431 = vlaneseq
    %v2432 = vshrl.u32 %v2431, 7
    %v2433 = vsub.s32 %v1490, %v2432
    %v2434 = vrot.slane %v1213, %v2433
    %v2435 = vsel %vm1495, %v2434, %v2430
    %v2436 = vlaneseq
    %v2437 = vshrl.u32 %v2436, 7
    %v2438 = vsub.s32 %v1497, %v2437
    %v2439 = vrot.slane %v1214, %v2438
    %v2440 = vsel %vm1502, %v2439, %v2435
    %v2441 = vlaneseq
    %v2442 = vshrl.u32 %v2441, 7
    %v2443 = vsub.s32 %v1504, %v2442
    %v2444 = vrot.slane %v1215, %v2443
    %v2445 = vsel %vm1509, %v2444, %v2440
    %v2446 = vlaneseq
    %v2447 = vshrl.u32 %v2446, 7
    %v2448 = vsub.s32 %v1511, %v2447
    %v2449 = vrot.slane %v1216, %v2448
    %v2450 = vsel %vm1516, %v2449, %v2445
    %v2451 = vlaneseq
    %v2452 = vshrl.u32 %v2451, 7
    %v2453 = vsub.s32 %v1518, %v2452
    %v2454 = vrot.slane %v1217, %v2453
    %v2455 = vsel %vm1523, %v2454, %v2450
    %v2456 = vlaneseq
    %v2457 = vshrl.u32 %v2456, 7
    %v2458 = vsub.s32 %v1525, %v2457
    %v2459 = vrot.slane %v1218, %v2458
    %v2460 = vsel %vm1530, %v2459, %v2455
    %v2461 = vlaneseq
    %v2462 = vshrl.u32 %v2461, 7
    %v2463 = vsub.s32 %v1532, %v2462
    %v2464 = vrot.slane %v1219, %v2463
    %v2465 = vsel %vm1537, %v2464, %v2460
    %v2466 = vlaneseq
    %v2467 = vshrl.u32 %v2466, 7
    %v2468 = vsub.s32 %v1429, %v2467
    %v2469 = vrot.slane %v1220, %v2468
    %v2470 = vlaneseq
    %v2471 = vshrl.u32 %v2470, 7
    %v2472 = vsub.s32 %v1434, %v2471
    %v2473 = vrot.slane %v1221, %v2472
    %v2474 = vsel %vm1439, %v2473, %v2469
    %v2475 = vlaneseq
    %v2476 = vshrl.u32 %v2475, 7
    %v2477 = vsub.s32 %v1441, %v2476
    %v2478 = vrot.slane %v1222, %v2477
    %v2479 = vsel %vm1446, %v2478, %v2474
    %v2480 = vlaneseq
    %v2481 = vshrl.u32 %v2480, 7
    %v2482 = vsub.s32 %v1448, %v2481
    %v2483 = vrot.slane %v1223, %v2482
    %v2484 = vsel %vm1453, %v2483, %v2479
    %v2485 = vlaneseq
    %v2486 = vshrl.u32 %v2485, 7
    %v2487 = vsub.s32 %v1455, %v2486
    %v2488 = vrot.slane %v1224, %v2487
    %v2489 = vsel %vm1460, %v2488, %v2484
    %v2490 = vlaneseq
    %v2491 = vshrl.u32 %v2490, 7
    %v2492 = vsub.s32 %v1462, %v2491
    %v2493 = vrot.slane %v1225, %v2492
    %v2494 = vsel %vm1467, %v2493, %v2489
    %v2495 = vlaneseq
    %v2496 = vshrl.u32 %v2495, 7
    %v2497 = vsub.s32 %v1469, %v2496
    %v2498 = vrot.slane %v1226, %v2497
    %v2499 = vsel %vm1474, %v2498, %v2494
    %v2500 = vlaneseq
    %v2501 = vshrl.u32 %v2500, 7
    %v2502 = vsub.s32 %v1476, %v2501
    %v2503 = vrot.slane %v1227, %v2502
    %v2504 = vsel %vm1481, %v2503, %v2499
    %v2505 = vlaneseq
    %v2506 = vshrl.u32 %v2505, 7
    %v2507 = vsub.s32 %v1483, %v2506
    %v2508 = vrot.slane %v1228, %v2507
    %v2509 = vsel %vm1488, %v2508, %v2504
    %v2510 = vlaneseq
    %v2511 = vshrl.u32 %v2510, 7
    %v2512 = vsub.s32 %v1490, %v2511
    %v2513 = vrot.slane %v1229, %v2512
    %v2514 = vsel %vm1495, %v2513, %v2509
    %v2515 = vlaneseq
    %v2516 = vshrl.u32 %v2515, 7
    %v2517 = vsub.s32 %v1497, %v2516
    %v2518 = vrot.slane %v1230, %v2517
    %v2519 = vsel %vm1502, %v2518, %v2514
    %v2520 = vlaneseq
    %v2521 = vshrl.u32 %v2520, 7
    %v2522 = vsub.s32 %v1504, %v2521
    %v2523 = vrot.slane %v1231, %v2522
    %v2524 = vsel %vm1509, %v2523, %v2519
    %v2525 = vlaneseq
    %v2526 = vshrl.u32 %v2525, 7
    %v2527 = vsub.s32 %v1511, %v2526
    %v2528 = vrot.slane %v1232, %v2527
    %v2529 = vsel %vm1516, %v2528, %v2524
    %v2530 = vlaneseq
    %v2531 = vshrl.u32 %v2530, 7
    %v2532 = vsub.s32 %v1518, %v2531
    %v2533 = vrot.slane %v1233, %v2532
    %v2534 = vsel %vm1523, %v2533, %v2529
    %v2535 = vlaneseq
    %v2536 = vshrl.u32 %v2535, 7
    %v2537 = vsub.s32 %v1525, %v2536
    %v2538 = vrot.slane %v1234, %v2537
    %v2539 = vsel %vm1530, %v2538, %v2534
    %v2540 = vlaneseq
    %v2541 = vshrl.u32 %v2540, 7
    %v2542 = vsub.s32 %v1532, %v2541
    %v2543 = vrot.slane %v1235, %v2542
    %v2544 = vsel %vm1537, %v2543, %v2539
    %v2545 = vlaneseq
    %v2546 = vshrl.u32 %v2545, 7
    %v2547 = vsub.s32 %v1429, %v2546
    %v2548 = vrot.slane %v1236, %v2547
    %v2549 = vlaneseq
    %v2550 = vshrl.u32 %v2549, 7
    %v2551 = vsub.s32 %v1434, %v2550
    %v2552 = vrot.slane %v1237, %v2551
    %v2553 = vsel %vm1439, %v2552, %v2548
    %v2554 = vlaneseq
    %v2555 = vshrl.u32 %v2554, 7
    %v2556 = vsub.s32 %v1441, %v2555
    %v2557 = vrot.slane %v1238, %v2556
    %v2558 = vsel %vm1446, %v2557, %v2553
    %v2559 = vlaneseq
    %v2560 = vshrl.u32 %v2559, 7
    %v2561 = vsub.s32 %v1448, %v2560
    %v2562 = vrot.slane %v1239, %v2561
    %v2563 = vsel %vm1453, %v2562, %v2558
    %v2564 = vlaneseq
    %v2565 = vshrl.u32 %v2564, 7
    %v2566 = vsub.s32 %v1455, %v2565
    %v2567 = vrot.slane %v1240, %v2566
    %v2568 = vsel %vm1460, %v2567, %v2563
    %v2569 = vlaneseq
    %v2570 = vshrl.u32 %v2569, 7
    %v2571 = vsub.s32 %v1462, %v2570
    %v2572 = vrot.slane %v1241, %v2571
    %v2573 = vsel %vm1467, %v2572, %v2568
    %v2574 = vlaneseq
    %v2575 = vshrl.u32 %v2574, 7
    %v2576 = vsub.s32 %v1469, %v2575
    %v2577 = vrot.slane %v1242, %v2576
    %v2578 = vsel %vm1474, %v2577, %v2573
    %v2579 = vlaneseq
    %v2580 = vshrl.u32 %v2579, 7
    %v2581 = vsub.s32 %v1476, %v2580
    %v2582 = vrot.slane %v1243, %v2581
    %v2583 = vsel %vm1481, %v2582, %v2578
    %v2584 = vlaneseq
    %v2585 = vshrl.u32 %v2584, 7
    %v2586 = vsub.s32 %v1483, %v2585
    %v2587 = vrot.slane %v1244, %v2586
    %v2588 = vsel %vm1488, %v2587, %v2583
    %v2589 = vlaneseq
    %v2590 = vshrl.u32 %v2589, 7
    %v2591 = vsub.s32 %v1490, %v2590
    %v2592 = vrot.slane %v1245, %v2591
    %v2593 = vsel %vm1495, %v2592, %v2588
    %v2594 = vlaneseq
    %v2595 = vshrl.u32 %v2594, 7
    %v2596 = vsub.s32 %v1497, %v2595
    %v2597 = vrot.slane %v1246, %v2596
    %v2598 = vsel %vm1502, %v2597, %v2593
    %v2599 = vlaneseq
    %v2600 = vshrl.u32 %v2599, 7
    %v2601 = vsub.s32 %v1504, %v2600
    %v2602 = vrot.slane %v1247, %v2601
    %v2603 = vsel %vm1509, %v2602, %v2598
    %v2604 = vlaneseq
    %v2605 = vshrl.u32 %v2604, 7
    %v2606 = vsub.s32 %v1511, %v2605
    %v2607 = vrot.slane %v1248, %v2606
    %v2608 = vsel %vm1516, %v2607, %v2603
    %v2609 = vlaneseq
    %v2610 = vshrl.u32 %v2609, 7
    %v2611 = vsub.s32 %v1518, %v2610
    %v2612 = vrot.slane %v1249, %v2611
    %v2613 = vsel %vm1523, %v2612, %v2608
    %v2614 = vlaneseq
    %v2615 = vshrl.u32 %v2614, 7
    %v2616 = vsub.s32 %v1525, %v2615
    %v2617 = vrot.slane %v1250, %v2616
    %v2618 = vsel %vm1530, %v2617, %v2613
    %v2619 = vlaneseq
    %v2620 = vshrl.u32 %v2619, 7
    %v2621 = vsub.s32 %v1532, %v2620
    %v2622 = vrot.slane %v1251, %v2621
    %v2623 = vsel %vm1537, %v2622, %v2618
    %v2624 = vlaneseq
    %v2625 = vshrl.u32 %v2624, 7
    %v2626 = vsub.s32 %v1429, %v2625
    %v2627 = vrot.slane %v1252, %v2626
    %v2628 = vlaneseq
    %v2629 = vshrl.u32 %v2628, 7
    %v2630 = vsub.s32 %v1434, %v2629
    %v2631 = vrot.slane %v1253, %v2630
    %v2632 = vsel %vm1439, %v2631, %v2627
    %v2633 = vlaneseq
    %v2634 = vshrl.u32 %v2633, 7
    %v2635 = vsub.s32 %v1441, %v2634
    %v2636 = vrot.slane %v1254, %v2635
    %v2637 = vsel %vm1446, %v2636, %v2632
    %v2638 = vlaneseq
    %v2639 = vshrl.u32 %v2638, 7
    %v2640 = vsub.s32 %v1448, %v2639
    %v2641 = vrot.slane %v1255, %v2640
    %v2642 = vsel %vm1453, %v2641, %v2637
    %v2643 = vlaneseq
    %v2644 = vshrl.u32 %v2643, 7
    %v2645 = vsub.s32 %v1455, %v2644
    %v2646 = vrot.slane %v1256, %v2645
    %v2647 = vsel %vm1460, %v2646, %v2642
    %v2648 = vlaneseq
    %v2649 = vshrl.u32 %v2648, 7
    %v2650 = vsub.s32 %v1462, %v2649
    %v2651 = vrot.slane %v1257, %v2650
    %v2652 = vsel %vm1467, %v2651, %v2647
    %v2653 = vlaneseq
    %v2654 = vshrl.u32 %v2653, 7
    %v2655 = vsub.s32 %v1469, %v2654
    %v2656 = vrot.slane %v1258, %v2655
    %v2657 = vsel %vm1474, %v2656, %v2652
    %v2658 = vlaneseq
    %v2659 = vshrl.u32 %v2658, 7
    %v2660 = vsub.s32 %v1476, %v2659
    %v2661 = vrot.slane %v1259, %v2660
    %v2662 = vsel %vm1481, %v2661, %v2657
    %v2663 = vlaneseq
    %v2664 = vshrl.u32 %v2663, 7
    %v2665 = vsub.s32 %v1483, %v2664
    %v2666 = vrot.slane %v1260, %v2665
    %v2667 = vsel %vm1488, %v2666, %v2662
    %v2668 = vlaneseq
    %v2669 = vshrl.u32 %v2668, 7
    %v2670 = vsub.s32 %v1490, %v2669
    %v2671 = vrot.slane %v1261, %v2670
    %v2672 = vsel %vm1495, %v2671, %v2667
    %v2673 = vlaneseq
    %v2674 = vshrl.u32 %v2673, 7
    %v2675 = vsub.s32 %v1497, %v2674
    %v2676 = vrot.slane %v1262, %v2675
    %v2677 = vsel %vm1502, %v2676, %v2672
    %v2678 = vlaneseq
    %v2679 = vshrl.u32 %v2678, 7
    %v2680 = vsub.s32 %v1504, %v2679
    %v2681 = vrot.slane %v1263, %v2680
    %v2682 = vsel %vm1509, %v2681, %v2677
    %v2683 = vlaneseq
    %v2684 = vshrl.u32 %v2683, 7
    %v2685 = vsub.s32 %v1511, %v2684
    %v2686 = vrot.slane %v1264, %v2685
    %v2687 = vsel %vm1516, %v2686, %v2682
    %v2688 = vlaneseq
    %v2689 = vshrl.u32 %v2688, 7
    %v2690 = vsub.s32 %v1518, %v2689
    %v2691 = vrot.slane %v1265, %v2690
    %v2692 = vsel %vm1523, %v2691, %v2687
    %v2693 = vlaneseq
    %v2694 = vshrl.u32 %v2693, 7
    %v2695 = vsub.s32 %v1525, %v2694
    %v2696 = vrot.slane %v1266, %v2695
    %v2697 = vsel %vm1530, %v2696, %v2692
    %v2698 = vlaneseq
    %v2699 = vshrl.u32 %v2698, 7
    %v2700 = vsub.s32 %v1532, %v2699
    %v2701 = vrot.slane %v1267, %v2700
    %v2702 = vsel %vm1537, %v2701, %v2697
    %v2703 = vlaneseq
    %v2704 = vshrl.u32 %v2703, 7
    %v2705 = vsub.s32 %v1429, %v2704
    %v2706 = vrot.slane %v1268, %v2705
    %v2707 = vlaneseq
    %v2708 = vshrl.u32 %v2707, 7
    %v2709 = vsub.s32 %v1434, %v2708
    %v2710 = vrot.slane %v1269, %v2709
    %v2711 = vsel %vm1439, %v2710, %v2706
    %v2712 = vlaneseq
    %v2713 = vshrl.u32 %v2712, 7
    %v2714 = vsub.s32 %v1441, %v2713
    %v2715 = vrot.slane %v1270, %v2714
    %v2716 = vsel %vm1446, %v2715, %v2711
    %v2717 = vlaneseq
    %v2718 = vshrl.u32 %v2717, 7
    %v2719 = vsub.s32 %v1448, %v2718
    %v2720 = vrot.slane %v1271, %v2719
    %v2721 = vsel %vm1453, %v2720, %v2716
    %v2722 = vlaneseq
    %v2723 = vshrl.u32 %v2722, 7
    %v2724 = vsub.s32 %v1455, %v2723
    %v2725 = vrot.slane %v1272, %v2724
    %v2726 = vsel %vm1460, %v2725, %v2721
    %v2727 = vlaneseq
    %v2728 = vshrl.u32 %v2727, 7
    %v2729 = vsub.s32 %v1462, %v2728
    %v2730 = vrot.slane %v1273, %v2729
    %v2731 = vsel %vm1467, %v2730, %v2726
    %v2732 = vlaneseq
    %v2733 = vshrl.u32 %v2732, 7
    %v2734 = vsub.s32 %v1469, %v2733
    %v2735 = vrot.slane %v1274, %v2734
    %v2736 = vsel %vm1474, %v2735, %v2731
    %v2737 = vlaneseq
    %v2738 = vshrl.u32 %v2737, 7
    %v2739 = vsub.s32 %v1476, %v2738
    %v2740 = vrot.slane %v1275, %v2739
    %v2741 = vsel %vm1481, %v2740, %v2736
    %v2742 = vlaneseq
    %v2743 = vshrl.u32 %v2742, 7
    %v2744 = vsub.s32 %v1483, %v2743
    %v2745 = vrot.slane %v1276, %v2744
    %v2746 = vsel %vm1488, %v2745, %v2741
    %v2747 = vlaneseq
    %v2748 = vshrl.u32 %v2747, 7
    %v2749 = vsub.s32 %v1490, %v2748
    %v2750 = vrot.slane %v1277, %v2749
    %v2751 = vsel %vm1495, %v2750, %v2746
    %v2752 = vlaneseq
    %v2753 = vshrl.u32 %v2752, 7
    %v2754 = vsub.s32 %v1497, %v2753
    %v2755 = vrot.slane %v1278, %v2754
    %v2756 = vsel %vm1502, %v2755, %v2751
    %v2757 = vlaneseq
    %v2758 = vshrl.u32 %v2757, 7
    %v2759 = vsub.s32 %v1504, %v2758
    %v2760 = vrot.slane %v1279, %v2759
    %v2761 = vsel %vm1509, %v2760, %v2756
    %v2762 = vlaneseq
    %v2763 = vshrl.u32 %v2762, 7
    %v2764 = vsub.s32 %v1511, %v2763
    %v2765 = vrot.slane %v1280, %v2764
    %v2766 = vsel %vm1516, %v2765, %v2761
    %v2767 = vlaneseq
    %v2768 = vshrl.u32 %v2767, 7
    %v2769 = vsub.s32 %v1518, %v2768
    %v2770 = vrot.slane %v1281, %v2769
    %v2771 = vsel %vm1523, %v2770, %v2766
    %v2772 = vlaneseq
    %v2773 = vshrl.u32 %v2772, 7
    %v2774 = vsub.s32 %v1525, %v2773
    %v2775 = vrot.slane %v1282, %v2774
    %v2776 = vsel %vm1530, %v2775, %v2771
    %v2777 = vlaneseq
    %v2778 = vshrl.u32 %v2777, 7
    %v2779 = vsub.s32 %v1532, %v2778
    %v2780 = vrot.slane %v1283, %v2779
    %v2781 = vsel %vm1537, %v2780, %v2776
    %v2782 = vlaneseq
    %v2783 = vshrl.u32 %v2782, 7
    %v2784 = vsub.s32 %v1429, %v2783
    %v2785 = vrot.slane %v1284, %v2784
    %v2786 = vlaneseq
    %v2787 = vshrl.u32 %v2786, 7
    %v2788 = vsub.s32 %v1434, %v2787
    %v2789 = vrot.slane %v1285, %v2788
    %v2790 = vsel %vm1439, %v2789, %v2785
    %v2791 = vlaneseq
    %v2792 = vshrl.u32 %v2791, 7
    %v2793 = vsub.s32 %v1441, %v2792
    %v2794 = vrot.slane %v1286, %v2793
    %v2795 = vsel %vm1446, %v2794, %v2790
    %v2796 = vlaneseq
    %v2797 = vshrl.u32 %v2796, 7
    %v2798 = vsub.s32 %v1448, %v2797
    %v2799 = vrot.slane %v1287, %v2798
    %v2800 = vsel %vm1453, %v2799, %v2795
    %v2801 = vlaneseq
    %v2802 = vshrl.u32 %v2801, 7
    %v2803 = vsub.s32 %v1455, %v2802
    %v2804 = vrot.slane %v1288, %v2803
    %v2805 = vsel %vm1460, %v2804, %v2800
    %v2806 = vlaneseq
    %v2807 = vshrl.u32 %v2806, 7
    %v2808 = vsub.s32 %v1462, %v2807
    %v2809 = vrot.slane %v1289, %v2808
    %v2810 = vsel %vm1467, %v2809, %v2805
    %v2811 = vlaneseq
    %v2812 = vshrl.u32 %v2811, 7
    %v2813 = vsub.s32 %v1469, %v2812
    %v2814 = vrot.slane %v1290, %v2813
    %v2815 = vsel %vm1474, %v2814, %v2810
    %v2816 = vlaneseq
    %v2817 = vshrl.u32 %v2816, 7
    %v2818 = vsub.s32 %v1476, %v2817
    %v2819 = vrot.slane %v1291, %v2818
    %v2820 = vsel %vm1481, %v2819, %v2815
    %v2821 = vlaneseq
    %v2822 = vshrl.u32 %v2821, 7
    %v2823 = vsub.s32 %v1483, %v2822
    %v2824 = vrot.slane %v1292, %v2823
    %v2825 = vsel %vm1488, %v2824, %v2820
    %v2826 = vlaneseq
    %v2827 = vshrl.u32 %v2826, 7
    %v2828 = vsub.s32 %v1490, %v2827
    %v2829 = vrot.slane %v1293, %v2828
    %v2830 = vsel %vm1495, %v2829, %v2825
    %v2831 = vlaneseq
    %v2832 = vshrl.u32 %v2831, 7
    %v2833 = vsub.s32 %v1497, %v2832
    %v2834 = vrot.slane %v1294, %v2833
    %v2835 = vsel %vm1502, %v2834, %v2830
    %v2836 = vlaneseq
    %v2837 = vshrl.u32 %v2836, 7
    %v2838 = vsub.s32 %v1504, %v2837
    %v2839 = vrot.slane %v1295, %v2838
    %v2840 = vsel %vm1509, %v2839, %v2835
    %v2841 = vlaneseq
    %v2842 = vshrl.u32 %v2841, 7
    %v2843 = vsub.s32 %v1511, %v2842
    %v2844 = vrot.slane %v1296, %v2843
    %v2845 = vsel %vm1516, %v2844, %v2840
    %v2846 = vlaneseq
    %v2847 = vshrl.u32 %v2846, 7
    %v2848 = vsub.s32 %v1518, %v2847
    %v2849 = vrot.slane %v1297, %v2848
    %v2850 = vsel %vm1523, %v2849, %v2845
    %v2851 = vlaneseq
    %v2852 = vshrl.u32 %v2851, 7
    %v2853 = vsub.s32 %v1525, %v2852
    %v2854 = vrot.slane %v1298, %v2853
    %v2855 = vsel %vm1530, %v2854, %v2850
    %v2856 = vlaneseq
    %v2857 = vshrl.u32 %v2856, 7
    %v2858 = vsub.s32 %v1532, %v2857
    %v2859 = vrot.slane %v1299, %v2858
    %v2860 = vsel %vm1537, %v2859, %v2855
    %v2861 = vsel %vm2092, %v2623, %v2307
    %v2862 = vsel %vm2092, %v2702, %v2386
    %v2863 = vsel %vm2092, %v2781, %v2465
    %v2864 = vsel %vm2092, %v2860, %v2544
    %v2869 = vld [vmem:[%s3] sm:$0x1]
    %v2870 = vld [vmem:[%s3 + $0x8] sm:$0xff]
    %v2871 = vld [vmem:[%s3 + $0x10] sm:$0xff]
    %v2872 = vld [vmem:[%s3 + $0x18] sm:$0x1f]
    %v2873 = vld [vmem:[%s2] sm:$0xff]
    %v2874 = vld [vmem:[%s2 + $0x8] sm:$0xff]
    %v2875 = vld [vmem:[%s2 + $0x10] sm:$0xff]
    %v2876 = vld [vmem:[%s2 + $0x18] sm:$0xff]
    %v2877 = vld [vmem:[%s2 + $0x20] sm:$0xff]
    %v2878 = vld [vmem:[%s2 + $0x28] sm:$0xff]
    %v2879 = vld [vmem:[%s2 + $0x30] sm:$0xff]
    %v2880 = vld [vmem:[%s2 + $0x38] sm:$0xff]
    %v2881 = vld [vmem:[%s2 + $0x40] sm:$0xff]
    %v2882 = vld [vmem:[%s2 + $0x48] sm:$0xff]
    %v2883 = vld [vmem:[%s2 + $0x50] sm:$0xff]
    %v2884 = vld [vmem:[%s2 + $0x58] sm:$0xff]
    %v2885 = vld [vmem:[%s2 + $0x60] sm:$0xff]
    %v2886 = vld [vmem:[%s2 + $0x68] sm:$0xff]
    %v2887 = vld [vmem:[%s2 + $0x70] sm:$0xff]
    %v2888 = vld [vmem:[%s2 + $0x78] sm:$0xff]
    %v2889 = vld [vmem:[%s2 + $0x80] sm:$0xff]
    %v2890 = vld [vmem:[%s2 + $0x88] sm:$0xff]
    %v2891 = vld [vmem:[%s2 + $0x90] sm:$0xff]
    %v2892 = vld [vmem:[%s2 + $0x98] sm:$0xff]
    %v2893 = vld [vmem:[%s2 + $0xa0] sm:$0xff]
    %v2894 = vld [vmem:[%s2 + $0xa8] sm:$0xff]
    %v2895 = vld [vmem:[%s2 + $0xb0] sm:$0xff]
    %v2896 = vld [vmem:[%s2 + $0xb8] sm:$0xff]
    %v2897 = vld [vmem:[%s2 + $0xc0] sm:$0xff]
    %v2898 = vld [vmem:[%s2 + $0xc8] sm:$0xff]
    %v2899 = vld [vmem:[%s2 + $0xd0] sm:$0xff]
    %v2900 = vld [vmem:[%s2 + $0xd8] sm:$0xff]
    %v2901 = vld [vmem:[%s2 + $0xe0] sm:$0xff]
    %v2902 = vld [vmem:[%s2 + $0xe8] sm:$0xff]
    %v2903 = vld [vmem:[%s2 + $0xf0] sm:$0xff]
    %v2904 = vld [vmem:[%s2 + $0xf8] sm:$0xff]
    %v2905 = vld [vmem:[%s2 + $0x100] sm:$0xff]
    %v2906 = vld [vmem:[%s2 + $0x108] sm:$0xff]
    %v2907 = vld [vmem:[%s2 + $0x110] sm:$0xff]
    %v2908 = vld [vmem:[%s2 + $0x118] sm:$0xff]
    %v2909 = vld [vmem:[%s2 + $0x120] sm:$0xff]
    %v2910 = vld [vmem:[%s2 + $0x128] sm:$0xff]
    %v2911 = vld [vmem:[%s2 + $0x130] sm:$0xff]
    %v2912 = vld [vmem:[%s2 + $0x138] sm:$0xff]
    %v2913 = vld [vmem:[%s2 + $0x140] sm:$0xff]
    %v2914 = vld [vmem:[%s2 + $0x148] sm:$0xff]
    %v2915 = vld [vmem:[%s2 + $0x150] sm:$0xff]
    %v2916 = vld [vmem:[%s2 + $0x158] sm:$0xff]
    %v2917 = vld [vmem:[%s2 + $0x160] sm:$0xff]
    %v2918 = vld [vmem:[%s2 + $0x168] sm:$0xff]
    %v2919 = vld [vmem:[%s2 + $0x170] sm:$0xff]
    %v2920 = vld [vmem:[%s2 + $0x178] sm:$0xff]
    %v2921 = vld [vmem:[%s2 + $0x180] sm:$0xff]
    %v2922 = vld [vmem:[%s2 + $0x188] sm:$0xff]
    %v2923 = vld [vmem:[%s2 + $0x190] sm:$0xff]
    %v2924 = vld [vmem:[%s2 + $0x198] sm:$0xff]
    %v2925 = vld [vmem:[%s2 + $0x1a0] sm:$0xff]
    %v2926 = vld [vmem:[%s2 + $0x1a8] sm:$0xff]
    %v2927 = vld [vmem:[%s2 + $0x1b0] sm:$0xff]
    %v2928 = vld [vmem:[%s2 + $0x1b8] sm:$0xff]
    %v2929 = vld [vmem:[%s2 + $0x1c0] sm:$0xff]
    %v2930 = vld [vmem:[%s2 + $0x1c8] sm:$0xff]
    %v2931 = vld [vmem:[%s2 + $0x1d0] sm:$0xff]
    %v2932 = vld [vmem:[%s2 + $0x1d8] sm:$0xff]
    %v2933 = vld [vmem:[%s2 + $0x1e0] sm:$0xff]
    %v2934 = vld [vmem:[%s2 + $0x1e8] sm:$0xff]
    %v2935 = vld [vmem:[%s2 + $0x1f0] sm:$0xff]
    %v2936 = vld [vmem:[%s2 + $0x1f8] sm:$0xff]
    %v2937 = vld [vmem:[%s2 + $0x200] sm:$0xff]
    %v2938 = vld [vmem:[%s2 + $0x208] sm:$0xff]
    %v2939 = vld [vmem:[%s2 + $0x210] sm:$0xff]
    %v2940 = vld [vmem:[%s2 + $0x218] sm:$0xff]
    %v2941 = vld [vmem:[%s2 + $0x220] sm:$0xff]
    %v2942 = vld [vmem:[%s2 + $0x228] sm:$0xff]
    %v2943 = vld [vmem:[%s2 + $0x230] sm:$0xff]
    %v2944 = vld [vmem:[%s2 + $0x238] sm:$0xff]
    %v2945 = vld [vmem:[%s2 + $0x240] sm:$0xff]
    %v2946 = vld [vmem:[%s2 + $0x248] sm:$0xff]
    %v2947 = vld [vmem:[%s2 + $0x250] sm:$0xff]
    %v2948 = vld [vmem:[%s2 + $0x258] sm:$0xff]
    %v2949 = vld [vmem:[%s2 + $0x260] sm:$0xff]
    %v2950 = vld [vmem:[%s2 + $0x268] sm:$0xff]
    %v2951 = vld [vmem:[%s2 + $0x270] sm:$0xff]
    %v2952 = vld [vmem:[%s2 + $0x278] sm:$0xff]
    %v2953 = vld [vmem:[%s2 + $0x280] sm:$0xff]
    %v2954 = vld [vmem:[%s2 + $0x288] sm:$0xff]
    %v2955 = vld [vmem:[%s2 + $0x290] sm:$0xff]
    %v2956 = vld [vmem:[%s2 + $0x298] sm:$0xff]
    %v2957 = vld [vmem:[%s2 + $0x2a0] sm:$0xff]
    %v2958 = vld [vmem:[%s2 + $0x2a8] sm:$0xff]
    %v2959 = vld [vmem:[%s2 + $0x2b0] sm:$0xff]
    %v2960 = vld [vmem:[%s2 + $0x2b8] sm:$0xff]
    %v2961 = vld [vmem:[%s2 + $0x2c0] sm:$0xff]
    %v2962 = vld [vmem:[%s2 + $0x2c8] sm:$0xff]
    %v2963 = vld [vmem:[%s2 + $0x2d0] sm:$0xff]
    %v2964 = vld [vmem:[%s2 + $0x2d8] sm:$0xff]
    %v2965 = vld [vmem:[%s2 + $0x2e0] sm:$0xff]
    %v2966 = vld [vmem:[%s2 + $0x2e8] sm:$0xff]
    %v2967 = vld [vmem:[%s2 + $0x2f0] sm:$0xff]
    %v2968 = vld [vmem:[%s2 + $0x2f8] sm:$0xff]
    %v2969 = vld [vmem:[%s2 + $0x300] sm:$0xff]
    %v2970 = vld [vmem:[%s2 + $0x308] sm:$0xff]
    %v2971 = vld [vmem:[%s2 + $0x310] sm:$0xff]
    %v2972 = vld [vmem:[%s2 + $0x318] sm:$0xff]
    %v2973 = vld [vmem:[%s2 + $0x320] sm:$0xff]
    %v2974 = vld [vmem:[%s2 + $0x328] sm:$0xff]
    %v2975 = vld [vmem:[%s2 + $0x330] sm:$0xff]
    %v2976 = vld [vmem:[%s2 + $0x338] sm:$0xff]
    %v2977 = vld [vmem:[%s2 + $0x340] sm:$0xff]
    %v2978 = vld [vmem:[%s2 + $0x348] sm:$0xff]
    %v2979 = vld [vmem:[%s2 + $0x350] sm:$0xff]
    %v2980 = vld [vmem:[%s2 + $0x358] sm:$0xff]
    %v2981 = vld [vmem:[%s2 + $0x360] sm:$0xff]
    %v2982 = vld [vmem:[%s2 + $0x368] sm:$0xff]
    %v2983 = vld [vmem:[%s2 + $0x370] sm:$0xff]
    %v2984 = vld [vmem:[%s2 + $0x378] sm:$0xff]
    %v2985 = vld [vmem:[%s2 + $0x380] sm:$0xff]
    %v2986 = vld [vmem:[%s2 + $0x388] sm:$0xff]
    %v2987 = vld [vmem:[%s2 + $0x390] sm:$0xff]
    %v2988 = vld [vmem:[%s2 + $0x398] sm:$0xff]
    %v2989 = vld [vmem:[%s2 + $0x3a0] sm:$0xff]
    %v2990 = vld [vmem:[%s2 + $0x3a8] sm:$0xff]
    %v2991 = vld [vmem:[%s2 + $0x3b0] sm:$0xff]
    %v2992 = vld [vmem:[%s2 + $0x3b8] sm:$0xff]
    %v2993 = vld [vmem:[%s2 + $0x3c0] sm:$0xff]
    %v2994 = vld [vmem:[%s2 + $0x3c8] sm:$0xff]
    %v2995 = vld [vmem:[%s2 + $0x3d0] sm:$0xff]
    %v2996 = vld [vmem:[%s2 + $0x3d8] sm:$0xff]
    %v2997 = vld [vmem:[%s2 + $0x3e0] sm:$0xff]
    %v2998 = vld [vmem:[%s2 + $0x3e8] sm:$0xff]
    %v2999 = vld [vmem:[%s2 + $0x3f0] sm:$0xff]
    %v3000 = vld [vmem:[%s2 + $0x3f8] sm:$0xff]
    %v3001 = vlaneseq
    %v3002 = vshrl.u32 %v3001, 7
    %v3003 = vsub.s32 0, %v3002
    %v3004 = vrot.slane %v2869, %v3003
    %3005 = vmatprep.subr.mxu0 0.0
    %3006 = vmatpush1.msra.mxu0 %v2873
    %3007 = vmatprep.subr.mxu0 0.0
    %3008 = vmatpush1.msra.mxu0 %v2874
    %3009 = vmatprep.subr.mxu0 0.0
    %3010 = vmatpush1.msra.mxu0 %v2875
    %3011 = vmatprep.subr.mxu0 0.0
    %3012 = vmatpush1.msra.mxu0 %v2876
    %3013 = vmatprep.subr.mxu0 0.0
    %3014 = vmatpush1.msra.mxu0 %v2877
    %3015 = vmatprep.subr.mxu0 0.0
    %3016 = vmatpush1.msra.mxu0 %v2878
    %3017 = vmatprep.subr.mxu0 0.0
    %3018 = vmatpush1.msra.mxu0 %v2879
    %3019 = vmatprep.subr.mxu0 0.0
    %3020 = vmatpush1.msra.mxu0 %v2880
    %3021 = vmatprep.subr.mxu0 0.0
    %3022 = vmatpush1.msra.mxu0 %v2881
    %3023 = vmatprep.subr.mxu0 0.0
    %3024 = vmatpush1.msra.mxu0 %v2882
    %3025 = vmatprep.subr.mxu0 0.0
    %3026 = vmatpush1.msra.mxu0 %v2883
    %3027 = vmatprep.subr.mxu0 0.0
    %3028 = vmatpush1.msra.mxu0 %v2884
    %3029 = vmatprep.subr.mxu0 0.0
    %3030 = vmatpush1.msra.mxu0 %v2885
    %3031 = vmatprep.subr.mxu0 0.0
    %3032 = vmatpush1.msra.mxu0 %v2886
    %3033 = vmatprep.subr.mxu0 0.0
    %3034 = vmatpush1.msra.mxu0 %v2887
    %3035 = vmatprep.subr.mxu0 0.0
    %3036 = vmatpush1.msra.mxu0 %v2888
    %3037 = vmatprep.subr.mxu0 0.0
    %3038 = vmatpush1.msra.mxu0 %v2889
    %3039 = vmatprep.subr.mxu0 0.0
    %3040 = vmatpush1.msra.mxu0 %v2890
    %3041 = vmatprep.subr.mxu0 0.0
    %3042 = vmatpush1.msra.mxu0 %v2891
    %3043 = vmatprep.subr.mxu0 0.0
    %3044 = vmatpush1.msra.mxu0 %v2892
    %3045 = vmatprep.subr.mxu0 0.0
    %3046 = vmatpush1.msra.mxu0 %v2893
    %3047 = vmatprep.subr.mxu0 0.0
    %3048 = vmatpush1.msra.mxu0 %v2894
    %3049 = vmatprep.subr.mxu0 0.0
    %3050 = vmatpush1.msra.mxu0 %v2895
    %3051 = vmatprep.subr.mxu0 0.0
    %3052 = vmatpush1.msra.mxu0 %v2896
    %3053 = vmatprep.subr.mxu0 0.0
    %3054 = vmatpush1.msra.mxu0 %v2897
    %3055 = vmatprep.subr.mxu0 0.0
    %3056 = vmatpush1.msra.mxu0 %v2898
    %3057 = vmatprep.subr.mxu0 0.0
    %3058 = vmatpush1.msra.mxu0 %v2899
    %3059 = vmatprep.subr.mxu0 0.0
    %3060 = vmatpush1.msra.mxu0 %v2900
    %3061 = vmatprep.subr.mxu0 0.0
    %3062 = vmatpush1.msra.mxu0 %v2901
    %3063 = vmatprep.subr.mxu0 0.0
    %3064 = vmatpush1.msra.mxu0 %v2902
    %3065 = vmatprep.subr.mxu0 0.0
    %3066 = vmatpush1.msra.mxu0 %v2903
    %3067 = vmatprep.subr.mxu0 0.0
    %3068 = vmatpush1.msra.mxu0 %v2904
    %3069 = vmatprep.mubr.f32.mxu0 %v2094
    %3070 = vmatmul.mubr.f32.gmra.mrb[0].mxu0 %v2093
    %v3071 = vpop.f32.mrb[0].mxu0
    %v3072 = vadd.f32 %v3004, %v3071
    %v3073 = vpop.f32.mrb[0].mxu0
    %3074 = vdwg.mxu0
    %3075 = vmatprep.subr.mxu0 0.0
    %3076 = vmatpush1.msra.mxu0 %v2905
    %3077 = vmatprep.subr.mxu0 0.0
    %3078 = vmatpush1.msra.mxu0 %v2906
    %3079 = vmatprep.subr.mxu0 0.0
    %3080 = vmatpush1.msra.mxu0 %v2907
    %3081 = vmatprep.subr.mxu0 0.0
    %3082 = vmatpush1.msra.mxu0 %v2908
    %3083 = vmatprep.subr.mxu0 0.0
    %3084 = vmatpush1.msra.mxu0 %v2909
    %3085 = vmatprep.subr.mxu0 0.0
    %3086 = vmatpush1.msra.mxu0 %v2910
    %3087 = vmatprep.subr.mxu0 0.0
    %3088 = vmatpush1.msra.mxu0 %v2911
    %3089 = vmatprep.subr.mxu0 0.0
    %3090 = vmatpush1.msra.mxu0 %v2912
    %3091 = vmatprep.subr.mxu0 0.0
    %3092 = vmatpush1.msra.mxu0 %v2913
    %3093 = vmatprep.subr.mxu0 0.0
    %3094 = vmatpush1.msra.mxu0 %v2914
    %3095 = vmatprep.subr.mxu0 0.0
    %3096 = vmatpush1.msra.mxu0 %v2915
    %3097 = vmatprep.subr.mxu0 0.0
    %3098 = vmatpush1.msra.mxu0 %v2916
    %3099 = vmatprep.subr.mxu0 0.0
    %3100 = vmatpush1.msra.mxu0 %v2917
    %3101 = vmatprep.subr.mxu0 0.0
    %3102 = vmatpush1.msra.mxu0 %v2918
    %3103 = vmatprep.subr.mxu0 0.0
    %3104 = vmatpush1.msra.mxu0 %v2919
    %3105 = vmatprep.subr.mxu0 0.0
    %3106 = vmatpush1.msra.mxu0 %v2920
    %3107 = vmatprep.subr.mxu0 0.0
    %3108 = vmatpush1.msra.mxu0 %v2921
    %3109 = vmatprep.subr.mxu0 0.0
    %3110 = vmatpush1.msra.mxu0 %v2922
    %3111 = vmatprep.subr.mxu0 0.0
    %3112 = vmatpush1.msra.mxu0 %v2923
    %3113 = vmatprep.subr.mxu0 0.0
    %3114 = vmatpush1.msra.mxu0 %v2924
    %3115 = vmatprep.subr.mxu0 0.0
    %3116 = vmatpush1.msra.mxu0 %v2925
    %3117 = vmatprep.subr.mxu0 0.0
    %3118 = vmatpush1.msra.mxu0 %v2926
    %3119 = vmatprep.subr.mxu0 0.0
    %3120 = vmatpush1.msra.mxu0 %v2927
    %3121 = vmatprep.subr.mxu0 0.0
    %3122 = vmatpush1.msra.mxu0 %v2928
    %3123 = vmatprep.subr.mxu0 0.0
    %3124 = vmatpush1.msra.mxu0 %v2929
    %3125 = vmatprep.subr.mxu0 0.0
    %3126 = vmatpush1.msra.mxu0 %v2930
    %3127 = vmatprep.subr.mxu0 0.0
    %3128 = vmatpush1.msra.mxu0 %v2931
    %3129 = vmatprep.subr.mxu0 0.0
    %3130 = vmatpush1.msra.mxu0 %v2932
    %3131 = vmatprep.subr.mxu0 0.0
    %3132 = vmatpush1.msra.mxu0 %v2933
    %3133 = vmatprep.subr.mxu0 0.0
    %3134 = vmatpush1.msra.mxu0 %v2934
    %3135 = vmatprep.subr.mxu0 0.0
    %3136 = vmatpush1.msra.mxu0 %v2935
    %3137 = vmatprep.subr.mxu0 0.0
    %3138 = vmatpush1.msra.mxu0 %v2936
    %3139 = vmatprep.mubr.f32.mxu0 %v2096
    %3140 = vmatmul.mubr.f32.gmra.mrb[0].mxu0 %v2095
    %v3141 = vpop.f32.mrb[0].mxu0
    %v3142 = vadd.f32 %v3072, %v3141
    %v3143 = vpop.f32.mrb[0].mxu0
    %3144 = vdwg.mxu0
    %3145 = vmatprep.subr.mxu0 0.0
    %3146 = vmatpush1.msra.mxu0 %v2937
    %3147 = vmatprep.subr.mxu0 0.0
    %3148 = vmatpush1.msra.mxu0 %v2938
    %3149 = vmatprep.subr.mxu0 0.0
    %3150 = vmatpush1.msra.mxu0 %v2939
    %3151 = vmatprep.subr.mxu0 0.0
    %3152 = vmatpush1.msra.mxu0 %v2940
    %3153 = vmatprep.subr.mxu0 0.0
    %3154 = vmatpush1.msra.mxu0 %v2941
    %3155 = vmatprep.subr.mxu0 0.0
    %3156 = vmatpush1.msra.mxu0 %v2942
    %3157 = vmatprep.subr.mxu0 0.0
    %3158 = vmatpush1.msra.mxu0 %v2943
    %3159 = vmatprep.subr.mxu0 0.0
    %3160 = vmatpush1.msra.mxu0 %v2944
    %3161 = vmatprep.subr.mxu0 0.0
    %3162 = vmatpush1.msra.mxu0 %v2945
    %3163 = vmatprep.subr.mxu0 0.0
    %3164 = vmatpush1.msra.mxu0 %v2946
    %3165 = vmatprep.subr.mxu0 0.0
    %3166 = vmatpush1.msra.mxu0 %v2947
    %3167 = vmatprep.subr.mxu0 0.0
    %3168 = vmatpush1.msra.mxu0 %v2948
    %3169 = vmatprep.subr.mxu0 0.0
    %3170 = vmatpush1.msra.mxu0 %v2949
    %3171 = vmatprep.subr.mxu0 0.0
    %3172 = vmatpush1.msra.mxu0 %v2950
    %3173 = vmatprep.subr.mxu0 0.0
    %3174 = vmatpush1.msra.mxu0 %v2951
    %3175 = vmatprep.subr.mxu0 0.0
    %3176 = vmatpush1.msra.mxu0 %v2952
    %3177 = vmatprep.subr.mxu0 0.0
    %3178 = vmatpush1.msra.mxu0 %v2953
    %3179 = vmatprep.subr.mxu0 0.0
    %3180 = vmatpush1.msra.mxu0 %v2954
    %3181 = vmatprep.subr.mxu0 0.0
    %3182 = vmatpush1.msra.mxu0 %v2955
    %3183 = vmatprep.subr.mxu0 0.0
    %3184 = vmatpush1.msra.mxu0 %v2956
    %3185 = vmatprep.subr.mxu0 0.0
    %3186 = vmatpush1.msra.mxu0 %v2957
    %3187 = vmatprep.subr.mxu0 0.0
    %3188 = vmatpush1.msra.mxu0 %v2958
    %3189 = vmatprep.subr.mxu0 0.0
    %3190 = vmatpush1.msra.mxu0 %v2959
    %3191 = vmatprep.subr.mxu0 0.0
    %3192 = vmatpush1.msra.mxu0 %v2960
    %3193 = vmatprep.subr.mxu0 0.0
    %3194 = vmatpush1.msra.mxu0 %v2961
    %3195 = vmatprep.subr.mxu0 0.0
    %3196 = vmatpush1.msra.mxu0 %v2962
    %3197 = vmatprep.subr.mxu0 0.0
    %3198 = vmatpush1.msra.mxu0 %v2963
    %3199 = vmatprep.subr.mxu0 0.0
    %3200 = vmatpush1.msra.mxu0 %v2964
    %3201 = vmatprep.subr.mxu0 0.0
    %3202 = vmatpush1.msra.mxu0 %v2965
    %3203 = vmatprep.subr.mxu0 0.0
    %3204 = vmatpush1.msra.mxu0 %v2966
    %3205 = vmatprep.subr.mxu0 0.0
    %3206 = vmatpush1.msra.mxu0 %v2967
    %3207 = vmatprep.subr.mxu0 0.0
    %3208 = vmatpush1.msra.mxu0 %v2968
    %3209 = vmatprep.mubr.f32.mxu0 %v2862
    %3210 = vmatmul.mubr.f32.gmra.mrb[0].mxu0 %v2861
    %v3211 = vpop.f32.mrb[0].mxu0
    %v3212 = vadd.f32 %v3142, %v3211
    %v3213 = vpop.f32.mrb[0].mxu0
    %3214 = vdwg.mxu0
    %3215 = vmatprep.subr.mxu0 0.0
    %3216 = vmatpush1.msra.mxu0 %v2969
    %3217 = vmatprep.subr.mxu0 0.0
    %3218 = vmatpush1.msra.mxu0 %v2970
    %3219 = vmatprep.subr.mxu0 0.0
    %3220 = vmatpush1.msra.mxu0 %v2971
    %3221 = vmatprep.subr.mxu0 0.0
    %3222 = vmatpush1.msra.mxu0 %v2972
    %3223 = vmatprep.subr.mxu0 0.0
    %3224 = vmatpush1.msra.mxu0 %v2973
    %3225 = vmatprep.subr.mxu0 0.0
    %3226 = vmatpush1.msra.mxu0 %v2974
    %3227 = vmatprep.subr.mxu0 0.0
    %3228 = vmatpush1.msra.mxu0 %v2975
    %3229 = vmatprep.subr.mxu0 0.0
    %3230 = vmatpush1.msra.mxu0 %v2976
    %3231 = vmatprep.subr.mxu0 0.0
    %3232 = vmatpush1.msra.mxu0 %v2977
    %3233 = vmatprep.subr.mxu0 0.0
    %3234 = vmatpush1.msra.mxu0 %v2978
    %3235 = vmatprep.subr.mxu0 0.0
    %3236 = vmatpush1.msra.mxu0 %v2979
    %3237 = vmatprep.subr.mxu0 0.0
    %3238 = vmatpush1.msra.mxu0 %v2980
    %3239 = vmatprep.subr.mxu0 0.0
    %3240 = vmatpush1.msra.mxu0 %v2981
    %3241 = vmatprep.subr.mxu0 0.0
    %3242 = vmatpush1.msra.mxu0 %v2982
    %3243 = vmatprep.subr.mxu0 0.0
    %3244 = vmatpush1.msra.mxu0 %v2983
    %3245 = vmatprep.subr.mxu0 0.0
    %3246 = vmatpush1.msra.mxu0 %v2984
    %3247 = vmatprep.subr.mxu0 0.0
    %3248 = vmatpush1.msra.mxu0 %v2985
    %3249 = vmatprep.subr.mxu0 0.0
    %3250 = vmatpush1.msra.mxu0 %v2986
    %3251 = vmatprep.subr.mxu0 0.0
    %3252 = vmatpush1.msra.mxu0 %v2987
    %3253 = vmatprep.subr.mxu0 0.0
    %3254 = vmatpush1.msra.mxu0 %v2988
    %3255 = vmatprep.subr.mxu0 0.0
    %3256 = vmatpush1.msra.mxu0 %v2989
    %3257 = vmatprep.subr.mxu0 0.0
    %3258 = vmatpush1.msra.mxu0 %v2990
    %3259 = vmatprep.subr.mxu0 0.0
    %3260 = vmatpush1.msra.mxu0 %v2991
    %3261 = vmatprep.subr.mxu0 0.0
    %3262 = vmatpush1.msra.mxu0 %v2992
    %3263 = vmatprep.subr.mxu0 0.0
    %3264 = vmatpush1.msra.mxu0 %v2993
    %3265 = vmatprep.subr.mxu0 0.0
    %3266 = vmatpush1.msra.mxu0 %v2994
    %3267 = vmatprep.subr.mxu0 0.0
    %3268 = vmatpush1.msra.mxu0 %v2995
    %3269 = vmatprep.subr.mxu0 0.0
    %3270 = vmatpush1.msra.mxu0 %v2996
    %3271 = vmatprep.subr.mxu0 0.0
    %3272 = vmatpush1.msra.mxu0 %v2997
    %3273 = vmatprep.subr.mxu0 0.0
    %3274 = vmatpush1.msra.mxu0 %v2998
    %3275 = vmatprep.subr.mxu0 0.0
    %3276 = vmatpush1.msra.mxu0 %v2999
    %3277 = vmatprep.subr.mxu0 0.0
    %3278 = vmatpush1.msra.mxu0 %v3000
    %3279 = vmatprep.mubr.f32.mxu0 %v2864
    %3280 = vmatmul.mubr.f32.gmra.mrb[0].mxu0 %v2863
    %v3281 = vpop.f32.mrb[0].mxu0
    %v3282 = vadd.f32 %v3212, %v3281
    %v3283 = vpop.f32.mrb[0].mxu0
    %3284 = vdwg.mxu0
    %vm3285 = vcmp.lt.s32.totalorder %v1429, 18
    %v3286 = vmax.f32 %v3282, 0.0
    %v3287 = vsel %vm3285, %v3286, %v3282
    %vm3288 = vcmask 171008
    %v3290 = vsel %vm3288, %v3287, 0
    %vm3292 = vcmask 1044480
    %v3294 = vsel %vm3292, %v2872, 0
    %3296 = vmatprep.subr.mxu0 0.0
    %3297 = vmatpush1.msra.mxu0 %v2870
    %3298 = vmatprep.subr.mxu0 0.0
    %3299 = vmatpush1.msra.mxu0 %v2871
    %3300 = vmatprep.subr.mxu0 0.0
    %3301 = vmatpush1.msra.mxu0 %v3294
    %3302 = vmatprep.subr.mxu0 0.0
    %3303 = vmatpush1.msra.mxu0 0.0
    %3304 = vmatprep.subr.mxu0 0.0
    %3305 = vmatpush1.msra.mxu0 0.0
    %3306 = vmatprep.subr.mxu0 0.0
    %3307 = vmatpush1.msra.mxu0 0.0
    %3308 = vmatprep.subr.mxu0 0.0
    %3309 = vmatpush1.msra.mxu0 0.0
    %3310 = vmatprep.subr.mxu0 0.0
    %3311 = vmatpush1.msra.mxu0 0.0
    %3312 = vmatprep.subr.mxu0 0.0
    %3313 = vmatpush1.msra.mxu0 0.0
    %3314 = vmatprep.subr.mxu0 0.0
    %3315 = vmatpush1.msra.mxu0 0.0
    %3316 = vmatprep.subr.mxu0 0.0
    %3317 = vmatpush1.msra.mxu0 0.0
    %3318 = vmatprep.subr.mxu0 0.0
    %3319 = vmatpush1.msra.mxu0 0.0
    %3320 = vmatprep.subr.mxu0 0.0
    %3321 = vmatpush1.msra.mxu0 0.0
    %3322 = vmatprep.subr.mxu0 0.0
    %3323 = vmatpush1.msra.mxu0 0.0
    %3324 = vmatprep.subr.mxu0 0.0
    %3325 = vmatpush1.msra.mxu0 0.0
    %3326 = vmatprep.subr.mxu0 0.0
    %3327 = vmatpush1.msra.mxu0 0.0
    %3328 = vmatprep.subr.mxu0 0.0
    %3329 = vmatpush1.msra.mxu0 0.0
    %3330 = vmatprep.subr.mxu0 0.0
    %3331 = vmatpush1.msra.mxu0 0.0
    %3332 = vmatprep.subr.mxu0 0.0
    %3333 = vmatpush1.msra.mxu0 0.0
    %3334 = vmatprep.subr.mxu0 0.0
    %3335 = vmatpush1.msra.mxu0 0.0
    %3336 = vmatprep.subr.mxu0 0.0
    %3337 = vmatpush1.msra.mxu0 0.0
    %3338 = vmatprep.subr.mxu0 0.0
    %3339 = vmatpush1.msra.mxu0 0.0
    %3340 = vmatprep.subr.mxu0 0.0
    %3341 = vmatpush1.msra.mxu0 0.0
    %3342 = vmatprep.subr.mxu0 0.0
    %3343 = vmatpush1.msra.mxu0 0.0
    %3344 = vmatprep.subr.mxu0 0.0
    %3345 = vmatpush1.msra.mxu0 0.0
    %3346 = vmatprep.subr.mxu0 0.0
    %3347 = vmatpush1.msra.mxu0 0.0
    %3348 = vmatprep.subr.mxu0 0.0
    %3349 = vmatpush1.msra.mxu0 0.0
    %3350 = vmatprep.subr.mxu0 0.0
    %3351 = vmatpush1.msra.mxu0 0.0
    %3352 = vmatprep.subr.mxu0 0.0
    %3353 = vmatpush1.msra.mxu0 0.0
    %3354 = vmatprep.subr.mxu0 0.0
    %3355 = vmatpush1.msra.mxu0 0.0
    %3356 = vmatprep.subr.mxu0 0.0
    %3357 = vmatpush1.msra.mxu0 0.0
    %3358 = vmatprep.subr.mxu0 0.0
    %3359 = vmatpush1.msra.mxu0 0.0
    %3360 = vmatprep.mubr.f32.mxu0 0.0
    %3361 = vmatmul.mubr.f32.gmra.mrb[0].mxu0 %v3290
    %v3362 = vpop.f32.mrb[0].mxu0
    %v3363 = vadd.f32 0.0, %v3362
    %v3364 = vpop.f32.mrb[0].mxu0
    %3365 = vdwg.mxu0
    %v3366 = vxor.u32 %v3363, 2147483648
    %v3367 = vmul.f32 %v3366, 1.442695
    %v3368 = vpow.pop %v3367
    %v3369 = vadd.f32 %v3368, 1.0
    %v3370 = vrcp.pop %v3369
    %v3371 = vmul.f32 1.0, %v3370
    %vm3372 = vcmask 164864
    %3373 = vst.msk [vmem:[#allocation2] sm:$0x3] %vm3372, %v3371
    // Predicated region
    $region18: #{tpu_custom_call.1} parent=1 // pred_check
      _
    $region19: #{tpu_custom_call.1} parent=1 // pred_check_branch
      %3375 = sbr.rel (0) target = $region21
    $region20: #{tpu_custom_call.1} parent=1 // pred_region
      %s3377 = ssub.s32 32, 32
      %3378 = vsyncadd [#allocation3], %s3377
      %s3380 = sshll.u32 [#allocation2], 4
      %s3381 = int_to_ptr.vmem [resolvable:$true] %s3380
      %3383 = dma.vmem_to_hbm [thread:$0]  %s3381, 32, %s4, [#allocation3]
    $region21: #{tpu_custom_call.1} parent=1 // pred_fallthru
      _
    // Predicated region
    $region22: #{tpu_custom_call.1} parent=1 // pred_check
      _
    $region23: #{tpu_custom_call.1} parent=1 // pred_check_branch
      %3385 = sbr.rel (0) target = $region25
    $region24: #{tpu_custom_call.1} parent=1 // pred_region
      %3386 = dma.done [#allocation3], 32
    $region25: #{tpu_custom_call.1} parent=1 // pred_fallthru
      _
    %3387 = vsyncpa [#allocation3], 1

</llo_original>
